<compile_context>
chip_gen: v6e
topology: v6e:2x2x1
jax: 0.10.0
libtpu: 0.0.40
codegen_flags: <defaults>
</compile_context>

<pallas_src>
import functools

import jax
import jax.numpy as jnp
import numpy as np
from jax import lax
from jax.experimental import pallas as pl
from jax.experimental.pallas import tpu as pltpu


# ----------------------------- fused kernel -----------------------------

def _stack_kernel(kernel_size, dilations, L, C_pad,
                  x_ref, w_ref, b_ref, o_ref):
    """Full DilatedConvStack for one batch element.

    x_ref: (1, L, C_pad)                 channels-last activations
    w_ref: (2*n_blocks, K*C_pad, C_pad)  BN-folded, im2col-reshaped conv weights
    b_ref: (ceil8(2*n_blocks), C_pad)    BN-folded conv biases
    o_ref: (1, L, C_pad)
    """
    K = kernel_size
    center = (K - 1) // 2
    # Row index inside this sequence, for zero-padding masks at the boundaries.
    l_idx = lax.broadcasted_iota(jnp.int32, (L, C_pad), 0)

    def dilated_conv(inp, conv_idx, dil):
        # im2col: K dilated taps gathered via sublane rotation (XLU) + mask (VPU),
        # concatenated along lanes, then ONE MXU matmul with (K*C_pad, C_pad).
        cols = []
        for k in range(K):
            off = (k - center) * dil              # y[l] consumes inp[l + off]
            if off == 0:
                cols.append(inp)
            else:
                shifted = pltpu.roll(inp, shift=(-off) % L, axis=0)
                valid = (l_idx + off >= 0) & (l_idx + off < L)
                cols.append(jnp.where(valid, shifted, 0.0))
        x_cat = jnp.concatenate(cols, axis=1)      # (L, K*C_pad)
        acc = jnp.dot(x_cat, w_ref[conv_idx],
                      preferred_element_type=jnp.float32)
        return acc + b_ref[conv_idx:conv_idx + 1, :]   # folded BN shift included

    h = x_ref[0]                                   # (L, C_pad), f32
    for blk, dil in enumerate(dilations):
        c1 = dilated_conv(h, 2 * blk, dil)
        a1 = jnp.maximum(c1, 0.0)                  # relu(bn1(conv1(x)))
        c2 = dilated_conv(a1, 2 * blk + 1, dil)
        h = jnp.maximum(c2 + h, 0.0)               # bn2(conv2(.)) + identity res, relu
    o_ref[0] = h


def dilated_conv_stack_pallas(x_ncl, w_packed, b_packed, kernel_size, dilations):
    """x_ncl: (B, C, L) float32 (PyTorch NCL). Returns (B, C, L)."""
    B, C, L = x_ncl.shape
    C_pad = w_packed.shape[-1]
    assert L % 8 == 0, "L must be sublane-aligned"  # TODO(synk): halo/mask for general L

    x = jnp.transpose(x_ncl, (0, 2, 1))                      # (B, L, C)
    x = jnp.pad(x, ((0, 0), (0, 0), (0, C_pad - C)))         # lane-dense channels

    kern = functools.partial(_stack_kernel, kernel_size, tuple(dilations), L, C_pad)

    out = pl.pallas_call(
        kern,
        out_shape=jax.ShapeDtypeStruct((B, L, C_pad), jnp.float32),
        grid=(B,),
        in_specs=[
            pl.BlockSpec((1, L, C_pad), lambda b: (b, 0, 0)),
            pl.BlockSpec(w_packed.shape, lambda b: (0, 0, 0)),   # resident weights
            pl.BlockSpec(b_packed.shape, lambda b: (0, 0)),      # resident biases
        ],
        out_specs=pl.BlockSpec((1, L, C_pad), lambda b: (b, 0, 0)),
        compiler_params=pltpu.CompilerParams(
            dimension_semantics=("parallel",)),                  # v7x: 2 TCs split batch
    )(x, w_packed, b_packed)

    return jnp.transpose(out[:, :, :C], (0, 2, 1))               # -> (B, C, L)


# ----------------------------- parameter prep -----------------------------

def make_resblock_params(key, C, K):
    """Synthetic Conv1d + eval-mode BatchNorm params (kernel-native layout)."""
    ks = jax.random.split(key, 12)
    eps = 1e-5

    def conv_params(kw, kb):
        w = 0.1 * jax.random.normal(kw, (K, C, C), jnp.float32)   # (tap, Cin, Cout)
        b = 0.1 * jax.random.normal(kb, (C,), jnp.float32)
        return w, b

    def bn_params(kg, kb2, km, kv):
        gamma = 1.0 + 0.1 * jax.random.normal(kg, (C,), jnp.float32)
        beta = 0.1 * jax.random.normal(kb2, (C,), jnp.float32)
        mean = 0.05 * jax.random.normal(km, (C,), jnp.float32)
        var = 1.0 + 0.1 * jnp.abs(jax.random.normal(kv, (C,), jnp.float32))
        scale = gamma / jnp.sqrt(var + eps)
        shift = beta - mean * scale
        return scale, shift

    w1, b1 = conv_params(ks[0], ks[1])
    s1, sh1 = bn_params(ks[2], ks[3], ks[4], ks[5])
    w2, b2 = conv_params(ks[6], ks[7])
    s2, sh2 = bn_params(ks[8], ks[9], ks[10], ks[11])
    return (w1, b1, s1, sh1, w2, b2, s2, sh2)


def pack_stack_params(all_params, K, C, C_pad):
    """Fold BN into conv weights/bias, pad channels to C_pad, stack all convs."""
    folded = []          # unpadded folded params for the pure-JAX reference
    w_list, b_list = [], []
    for (w1, b1, s1, sh1, w2, b2, s2, sh2) in all_params:
        block_folded = []
        for (w, b, s, sh) in ((w1, b1, s1, sh1), (w2, b2, s2, sh2)):
            wf = w * s[None, None, :]          # scale output channels
            bf = b * s + sh
            block_folded += [wf, bf]
            wp = jnp.zeros((K, C_pad, C_pad), jnp.float32).at[:, :C, :C].set(wf)
            bp = jnp.zeros((C_pad,), jnp.float32).at[:C].set(bf)
            w_list.append(wp.reshape(K * C_pad, C_pad))   # im2col weight layout
            b_list.append(bp)
        folded.append(tuple(block_folded))                # (wf1, bf1, wf2, bf2)
    w_packed = jnp.stack(w_list)                          # (2*n_blocks, K*C_pad, C_pad)
    b_packed = jnp.stack(b_list)                          # (2*n_blocks, C_pad)
    pad_rows = (-b_packed.shape[0]) % 8                   # sublane-align bias rows
    if pad_rows:
        b_packed = jnp.pad(b_packed, ((0, pad_rows), (0, 0)))
    return w_packed, b_packed, folded


# ----------------------------- pure-JAX reference -----------------------------

def stack_ref(x_ncl, folded_params, K, dilations):
    x = jnp.transpose(x_ncl, (0, 2, 1))                   # (B, L, C)
    dn = ('NWC', 'WIO', 'NWC')
    for (w1, b1, w2, b2), dil in zip(folded_params, dilations):
        pad = (K - 1) // 2 * dil
        c1 = lax.conv_general_dilated(x, w1, window_strides=(1,),
                                      padding=[(pad, pad)], rhs_dilation=(dil,),
                                      dimension_numbers=dn) + b1
        h = jnp.maximum(c1, 0.0)
        c2 = lax.conv_general_dilated(h, w2, window_strides=(1,),
                                      padding=[(pad, pad)], rhs_dilation=(dil,),
                                      dimension_numbers=dn) + b2
        x = jnp.maximum(c2 + x, 0.0)
    return jnp.transpose(x, (0, 2, 1))


# ----------------------------- main -----------------------------

if __name__ == "__main__":
    B, C, L = 2, 32, 16          # batch, hidden_dim (channels), sequence length
    kernel_size = 3
    dilations = (1, 2, 4)        # stride=1 => identity residual path (as in ResBlock)
    C_PAD = 128                  # lane-dense channel padding

    key = jax.random.PRNGKey(0)
    kx, kp = jax.random.split(key)
    x = jax.random.normal(kx, (B, C, L), jnp.float32)     # PyTorch NCL layout

    pkeys = jax.random.split(kp, len(dilations))
    all_params = [make_resblock_params(k, C, kernel_size) for k in pkeys]
    w_packed, b_packed, folded = pack_stack_params(all_params, kernel_size, C, C_PAD)

    out = dilated_conv_stack_pallas(x, w_packed, b_packed, kernel_size, dilations)
    out = jax.block_until_ready(out)

    ref = jax.block_until_ready(stack_ref(x, folded, kernel_size, dilations))
    np.testing.assert_allclose(np.asarray(out), np.asarray(ref), rtol=1e-4, atol=1e-4)
    assert out.shape == (B, C, L)

    print("KERNEL_OK")
</pallas_src>

<mosaic_0001>
module attributes {stable_mosaic.version = 11 : i64} {
  func.func @_stack_kernel(%arg0: i32, %arg1: memref<1x16x128xf32, #tpu.memory_space<vmem>>, %arg2: memref<6x384x128xf32, #tpu.memory_space<vmem>>, %arg3: memref<8x128xf32, #tpu.memory_space<vmem>>, %arg4: memref<1x16x128xf32, #tpu.memory_space<vmem>>) attributes {dimension_semantics = [#tpu.dimension_semantics<parallel>], iteration_bounds = array<i64: 2>, scalar_prefetch = 0 : i64, scratch_operands = 0 : i64, tpu.core_type = #tpu.core_type<tc>, window_params = [{transform_indices = @transform_0, window_bounds = array<i64: 1, 16, 128>}, {pipeline_mode = #tpu.pipeline_mode<synchronous>, transform_indices = @transform_1, window_bounds = array<i64: 6, 384, 128>}, {pipeline_mode = #tpu.pipeline_mode<synchronous>, transform_indices = @transform_2, window_bounds = array<i64: 8, 128>}, {transform_indices = @transform_3, window_bounds = array<i64: 1, 16, 128>}]} {
    %0 = tpu.iota {dimensions = array<i32: 0>} : vector<16x128xi32>
    %c0 = arith.constant 0 : index
    %c0_0 = arith.constant 0 : index
    %c0_1 = arith.constant 0 : index
    %1 = vector.load %arg1[%c0, %c0_0, %c0_1] : memref<1x16x128xf32, #tpu.memory_space<vmem>>, vector<1x16x128xf32>
    %2 = vector.shape_cast %1 : vector<1x16x128xf32> to vector<16x128xf32>
    %c1_i32 = arith.constant 1 : i32
    %3 = tpu.dynamic_rotate %2 by %c1_i32 dim 0 : vector<16x128xf32>, i32 -> vector<16x128xf32>
    %c-1_i32 = arith.constant -1 : i32
    %4 = vector.broadcast %c-1_i32 : i32 to vector<16x128xi32>
    %5 = arith.addi %0, %4 : vector<16x128xi32>
    %c0_i32 = arith.constant 0 : i32
    %6 = vector.broadcast %c0_i32 : i32 to vector<16x128xi32>
    %7 = arith.cmpi sge, %5, %6 : vector<16x128xi32>
    %c-1_i32_2 = arith.constant -1 : i32
    %8 = vector.broadcast %c-1_i32_2 : i32 to vector<16x128xi32>
    %9 = arith.addi %0, %8 : vector<16x128xi32>
    %c16_i32 = arith.constant 16 : i32
    %10 = vector.broadcast %c16_i32 : i32 to vector<16x128xi32>
    %11 = arith.cmpi slt, %9, %10 : vector<16x128xi32>
    %12 = arith.andi %7, %11 : vector<16x128xi1>
    %cst = arith.constant 0.000000e+00 : f32
    %13 = vector.broadcast %cst : f32 to vector<16x128xf32>
    %14 = arith.select %12, %3, %13 : vector<16x128xi1>, vector<16x128xf32>
    %c15_i32 = arith.constant 15 : i32
    %15 = tpu.dynamic_rotate %2 by %c15_i32 dim 0 : vector<16x128xf32>, i32 -> vector<16x128xf32>
    %c1_i32_3 = arith.constant 1 : i32
    %16 = vector.broadcast %c1_i32_3 : i32 to vector<16x128xi32>
    %17 = arith.addi %0, %16 : vector<16x128xi32>
    %c0_i32_4 = arith.constant 0 : i32
    %18 = vector.broadcast %c0_i32_4 : i32 to vector<16x128xi32>
    %19 = arith.cmpi sge, %17, %18 : vector<16x128xi32>
    %c1_i32_5 = arith.constant 1 : i32
    %20 = vector.broadcast %c1_i32_5 : i32 to vector<16x128xi32>
    %21 = arith.addi %0, %20 : vector<16x128xi32>
    %c16_i32_6 = arith.constant 16 : i32
    %22 = vector.broadcast %c16_i32_6 : i32 to vector<16x128xi32>
    %23 = arith.cmpi slt, %21, %22 : vector<16x128xi32>
    %24 = arith.andi %19, %23 : vector<16x128xi1>
    %cst_7 = arith.constant 0.000000e+00 : f32
    %25 = vector.broadcast %cst_7 : f32 to vector<16x128xf32>
    %26 = arith.select %24, %15, %25 : vector<16x128xi1>, vector<16x128xf32>
    %27 = tpu.concatenate %14, %2, %26 in 1 : vector<16x128xf32>, vector<16x128xf32>, vector<16x128xf32> -> vector<16x384xf32>
    %c0_8 = arith.constant 0 : index
    %c0_9 = arith.constant 0 : index
    %c0_10 = arith.constant 0 : index
    %28 = vector.load %arg2[%c0_8, %c0_9, %c0_10] : memref<6x384x128xf32, #tpu.memory_space<vmem>>, vector<1x384x128xf32>
    %29 = vector.shape_cast %28 : vector<1x384x128xf32> to vector<384x128xf32>
    %cst_11 = arith.constant dense<0.000000e+00> : vector<16x128xf32>
    %30 = tpu.matmul %27, %29, %cst_11 {dimension_numbers = #tpu.dot_dimension_numbers<[1], [0], [0], [1], [0, 0, 1, 1], [], []>} : vector<16x384xf32>, vector<384x128xf32>, vector<16x128xf32> -> vector<16x128xf32>
    %c0_12 = arith.constant 0 : index
    %c0_13 = arith.constant 0 : index
    %31 = vector.load %arg3[%c0_12, %c0_13] : memref<8x128xf32, #tpu.memory_space<vmem>>, vector<1x128xf32>
    %32 = vector.broadcast %31 : vector<1x128xf32> to vector<16x128xf32>
    %33 = arith.addf %30, %32 : vector<16x128xf32>
    %cst_14 = arith.constant 0.000000e+00 : f32
    %34 = vector.broadcast %cst_14 : f32 to vector<16x128xf32>
    %35 = arith.maximumf %33, %34 : vector<16x128xf32>
    %c1_i32_15 = arith.constant 1 : i32
    %36 = tpu.dynamic_rotate %35 by %c1_i32_15 dim 0 : vector<16x128xf32>, i32 -> vector<16x128xf32>
    %c-1_i32_16 = arith.constant -1 : i32
    %37 = vector.broadcast %c-1_i32_16 : i32 to vector<16x128xi32>
    %38 = arith.addi %0, %37 : vector<16x128xi32>
    %c0_i32_17 = arith.constant 0 : i32
    %39 = vector.broadcast %c0_i32_17 : i32 to vector<16x128xi32>
    %40 = arith.cmpi sge, %38, %39 : vector<16x128xi32>
    %c-1_i32_18 = arith.constant -1 : i32
    %41 = vector.broadcast %c-1_i32_18 : i32 to vector<16x128xi32>
    %42 = arith.addi %0, %41 : vector<16x128xi32>
    %c16_i32_19 = arith.constant 16 : i32
    %43 = vector.broadcast %c16_i32_19 : i32 to vector<16x128xi32>
    %44 = arith.cmpi slt, %42, %43 : vector<16x128xi32>
    %45 = arith.andi %40, %44 : vector<16x128xi1>
    %cst_20 = arith.constant 0.000000e+00 : f32
    %46 = vector.broadcast %cst_20 : f32 to vector<16x128xf32>
    %47 = arith.select %45, %36, %46 : vector<16x128xi1>, vector<16x128xf32>
    %c15_i32_21 = arith.constant 15 : i32
    %48 = tpu.dynamic_rotate %35 by %c15_i32_21 dim 0 : vector<16x128xf32>, i32 -> vector<16x128xf32>
    %c1_i32_22 = arith.constant 1 : i32
    %49 = vector.broadcast %c1_i32_22 : i32 to vector<16x128xi32>
    %50 = arith.addi %0, %49 : vector<16x128xi32>
    %c0_i32_23 = arith.constant 0 : i32
    %51 = vector.broadcast %c0_i32_23 : i32 to vector<16x128xi32>
    %52 = arith.cmpi sge, %50, %51 : vector<16x128xi32>
    %c1_i32_24 = arith.constant 1 : i32
    %53 = vector.broadcast %c1_i32_24 : i32 to vector<16x128xi32>
    %54 = arith.addi %0, %53 : vector<16x128xi32>
    %c16_i32_25 = arith.constant 16 : i32
    %55 = vector.broadcast %c16_i32_25 : i32 to vector<16x128xi32>
    %56 = arith.cmpi slt, %54, %55 : vector<16x128xi32>
    %57 = arith.andi %52, %56 : vector<16x128xi1>
    %cst_26 = arith.constant 0.000000e+00 : f32
    %58 = vector.broadcast %cst_26 : f32 to vector<16x128xf32>
    %59 = arith.select %57, %48, %58 : vector<16x128xi1>, vector<16x128xf32>
    %60 = tpu.concatenate %47, %35, %59 in 1 : vector<16x128xf32>, vector<16x128xf32>, vector<16x128xf32> -> vector<16x384xf32>
    %c1 = arith.constant 1 : index
    %c0_27 = arith.constant 0 : index
    %c0_28 = arith.constant 0 : index
    %61 = vector.load %arg2[%c1, %c0_27, %c0_28] : memref<6x384x128xf32, #tpu.memory_space<vmem>>, vector<1x384x128xf32>
    %62 = vector.shape_cast %61 : vector<1x384x128xf32> to vector<384x128xf32>
    %cst_29 = arith.constant dense<0.000000e+00> : vector<16x128xf32>
    %63 = tpu.matmul %60, %62, %cst_29 {dimension_numbers = #tpu.dot_dimension_numbers<[1], [0], [0], [1], [0, 0, 1, 1], [], []>} : vector<16x384xf32>, vector<384x128xf32>, vector<16x128xf32> -> vector<16x128xf32>
    %c1_30 = arith.constant 1 : index
    %c0_31 = arith.constant 0 : index
    %64 = vector.load %arg3[%c1_30, %c0_31] : memref<8x128xf32, #tpu.memory_space<vmem>>, vector<1x128xf32>
    %65 = vector.broadcast %64 : vector<1x128xf32> to vector<16x128xf32>
    %66 = arith.addf %63, %65 : vector<16x128xf32>
    %67 = arith.addf %66, %2 : vector<16x128xf32>
    %cst_32 = arith.constant 0.000000e+00 : f32
    %68 = vector.broadcast %cst_32 : f32 to vector<16x128xf32>
    %69 = arith.maximumf %67, %68 : vector<16x128xf32>
    %c2_i32 = arith.constant 2 : i32
    %70 = tpu.dynamic_rotate %69 by %c2_i32 dim 0 : vector<16x128xf32>, i32 -> vector<16x128xf32>
    %c-2_i32 = arith.constant -2 : i32
    %71 = vector.broadcast %c-2_i32 : i32 to vector<16x128xi32>
    %72 = arith.addi %0, %71 : vector<16x128xi32>
    %c0_i32_33 = arith.constant 0 : i32
    %73 = vector.broadcast %c0_i32_33 : i32 to vector<16x128xi32>
    %74 = arith.cmpi sge, %72, %73 : vector<16x128xi32>
    %c-2_i32_34 = arith.constant -2 : i32
    %75 = vector.broadcast %c-2_i32_34 : i32 to vector<16x128xi32>
    %76 = arith.addi %0, %75 : vector<16x128xi32>
    %c16_i32_35 = arith.constant 16 : i32
    %77 = vector.broadcast %c16_i32_35 : i32 to vector<16x128xi32>
    %78 = arith.cmpi slt, %76, %77 : vector<16x128xi32>
    %79 = arith.andi %74, %78 : vector<16x128xi1>
    %cst_36 = arith.constant 0.000000e+00 : f32
    %80 = vector.broadcast %cst_36 : f32 to vector<16x128xf32>
    %81 = arith.select %79, %70, %80 : vector<16x128xi1>, vector<16x128xf32>
    %c14_i32 = arith.constant 14 : i32
    %82 = tpu.dynamic_rotate %69 by %c14_i32 dim 0 : vector<16x128xf32>, i32 -> vector<16x128xf32>
    %c2_i32_37 = arith.constant 2 : i32
    %83 = vector.broadcast %c2_i32_37 : i32 to vector<16x128xi32>
    %84 = arith.addi %0, %83 : vector<16x128xi32>
    %c0_i32_38 = arith.constant 0 : i32
    %85 = vector.broadcast %c0_i32_38 : i32 to vector<16x128xi32>
    %86 = arith.cmpi sge, %84, %85 : vector<16x128xi32>
    %c2_i32_39 = arith.constant 2 : i32
    %87 = vector.broadcast %c2_i32_39 : i32 to vector<16x128xi32>
    %88 = arith.addi %0, %87 : vector<16x128xi32>
    %c16_i32_40 = arith.constant 16 : i32
    %89 = vector.broadcast %c16_i32_40 : i32 to vector<16x128xi32>
    %90 = arith.cmpi slt, %88, %89 : vector<16x128xi32>
    %91 = arith.andi %86, %90 : vector<16x128xi1>
    %cst_41 = arith.constant 0.000000e+00 : f32
    %92 = vector.broadcast %cst_41 : f32 to vector<16x128xf32>
    %93 = arith.select %91, %82, %92 : vector<16x128xi1>, vector<16x128xf32>
    %94 = tpu.concatenate %81, %69, %93 in 1 : vector<16x128xf32>, vector<16x128xf32>, vector<16x128xf32> -> vector<16x384xf32>
    %c2 = arith.constant 2 : index
    %c0_42 = arith.constant 0 : index
    %c0_43 = arith.constant 0 : index
    %95 = vector.load %arg2[%c2, %c0_42, %c0_43] : memref<6x384x128xf32, #tpu.memory_space<vmem>>, vector<1x384x128xf32>
    %96 = vector.shape_cast %95 : vector<1x384x128xf32> to vector<384x128xf32>
    %cst_44 = arith.constant dense<0.000000e+00> : vector<16x128xf32>
    %97 = tpu.matmul %94, %96, %cst_44 {dimension_numbers = #tpu.dot_dimension_numbers<[1], [0], [0], [1], [0, 0, 1, 1], [], []>} : vector<16x384xf32>, vector<384x128xf32>, vector<16x128xf32> -> vector<16x128xf32>
    %c2_45 = arith.constant 2 : index
    %c0_46 = arith.constant 0 : index
    %98 = vector.load %arg3[%c2_45, %c0_46] : memref<8x128xf32, #tpu.memory_space<vmem>>, vector<1x128xf32>
    %99 = vector.broadcast %98 : vector<1x128xf32> to vector<16x128xf32>
    %100 = arith.addf %97, %99 : vector<16x128xf32>
    %cst_47 = arith.constant 0.000000e+00 : f32
    %101 = vector.broadcast %cst_47 : f32 to vector<16x128xf32>
    %102 = arith.maximumf %100, %101 : vector<16x128xf32>
    %c2_i32_48 = arith.constant 2 : i32
    %103 = tpu.dynamic_rotate %102 by %c2_i32_48 dim 0 : vector<16x128xf32>, i32 -> vector<16x128xf32>
    %c-2_i32_49 = arith.constant -2 : i32
    %104 = vector.broadcast %c-2_i32_49 : i32 to vector<16x128xi32>
    %105 = arith.addi %0, %104 : vector<16x128xi32>
    %c0_i32_50 = arith.constant 0 : i32
    %106 = vector.broadcast %c0_i32_50 : i32 to vector<16x128xi32>
    %107 = arith.cmpi sge, %105, %106 : vector<16x128xi32>
    %c-2_i32_51 = arith.constant -2 : i32
    %108 = vector.broadcast %c-2_i32_51 : i32 to vector<16x128xi32>
    %109 = arith.addi %0, %108 : vector<16x128xi32>
    %c16_i32_52 = arith.constant 16 : i32
    %110 = vector.broadcast %c16_i32_52 : i32 to vector<16x128xi32>
    %111 = arith.cmpi slt, %109, %110 : vector<16x128xi32>
    %112 = arith.andi %107, %111 : vector<16x128xi1>
    %cst_53 = arith.constant 0.000000e+00 : f32
    %113 = vector.broadcast %cst_53 : f32 to vector<16x128xf32>
    %114 = arith.select %112, %103, %113 : vector<16x128xi1>, vector<16x128xf32>
    %c14_i32_54 = arith.constant 14 : i32
    %115 = tpu.dynamic_rotate %102 by %c14_i32_54 dim 0 : vector<16x128xf32>, i32 -> vector<16x128xf32>
    %c2_i32_55 = arith.constant 2 : i32
    %116 = vector.broadcast %c2_i32_55 : i32 to vector<16x128xi32>
    %117 = arith.addi %0, %116 : vector<16x128xi32>
    %c0_i32_56 = arith.constant 0 : i32
    %118 = vector.broadcast %c0_i32_56 : i32 to vector<16x128xi32>
    %119 = arith.cmpi sge, %117, %118 : vector<16x128xi32>
    %c2_i32_57 = arith.constant 2 : i32
    %120 = vector.broadcast %c2_i32_57 : i32 to vector<16x128xi32>
    %121 = arith.addi %0, %120 : vector<16x128xi32>
    %c16_i32_58 = arith.constant 16 : i32
    %122 = vector.broadcast %c16_i32_58 : i32 to vector<16x128xi32>
    %123 = arith.cmpi slt, %121, %122 : vector<16x128xi32>
    %124 = arith.andi %119, %123 : vector<16x128xi1>
    %cst_59 = arith.constant 0.000000e+00 : f32
    %125 = vector.broadcast %cst_59 : f32 to vector<16x128xf32>
    %126 = arith.select %124, %115, %125 : vector<16x128xi1>, vector<16x128xf32>
    %127 = tpu.concatenate %114, %102, %126 in 1 : vector<16x128xf32>, vector<16x128xf32>, vector<16x128xf32> -> vector<16x384xf32>
    %c3 = arith.constant 3 : index
    %c0_60 = arith.constant 0 : index
    %c0_61 = arith.constant 0 : index
    %128 = vector.load %arg2[%c3, %c0_60, %c0_61] : memref<6x384x128xf32, #tpu.memory_space<vmem>>, vector<1x384x128xf32>
    %129 = vector.shape_cast %128 : vector<1x384x128xf32> to vector<384x128xf32>
    %cst_62 = arith.constant dense<0.000000e+00> : vector<16x128xf32>
    %130 = tpu.matmul %127, %129, %cst_62 {dimension_numbers = #tpu.dot_dimension_numbers<[1], [0], [0], [1], [0, 0, 1, 1], [], []>} : vector<16x384xf32>, vector<384x128xf32>, vector<16x128xf32> -> vector<16x128xf32>
    %c3_63 = arith.constant 3 : index
    %c0_64 = arith.constant 0 : index
    %131 = vector.load %arg3[%c3_63, %c0_64] : memref<8x128xf32, #tpu.memory_space<vmem>>, vector<1x128xf32>
    %132 = vector.broadcast %131 : vector<1x128xf32> to vector<16x128xf32>
    %133 = arith.addf %130, %132 : vector<16x128xf32>
    %134 = arith.addf %133, %69 : vector<16x128xf32>
    %cst_65 = arith.constant 0.000000e+00 : f32
    %135 = vector.broadcast %cst_65 : f32 to vector<16x128xf32>
    %136 = arith.maximumf %134, %135 : vector<16x128xf32>
    %c4_i32 = arith.constant 4 : i32
    %137 = tpu.dynamic_rotate %136 by %c4_i32 dim 0 : vector<16x128xf32>, i32 -> vector<16x128xf32>
    %c-4_i32 = arith.constant -4 : i32
    %138 = vector.broadcast %c-4_i32 : i32 to vector<16x128xi32>
    %139 = arith.addi %0, %138 : vector<16x128xi32>
    %c0_i32_66 = arith.constant 0 : i32
    %140 = vector.broadcast %c0_i32_66 : i32 to vector<16x128xi32>
    %141 = arith.cmpi sge, %139, %140 : vector<16x128xi32>
    %c-4_i32_67 = arith.constant -4 : i32
    %142 = vector.broadcast %c-4_i32_67 : i32 to vector<16x128xi32>
    %143 = arith.addi %0, %142 : vector<16x128xi32>
    %c16_i32_68 = arith.constant 16 : i32
    %144 = vector.broadcast %c16_i32_68 : i32 to vector<16x128xi32>
    %145 = arith.cmpi slt, %143, %144 : vector<16x128xi32>
    %146 = arith.andi %141, %145 : vector<16x128xi1>
    %cst_69 = arith.constant 0.000000e+00 : f32
    %147 = vector.broadcast %cst_69 : f32 to vector<16x128xf32>
    %148 = arith.select %146, %137, %147 : vector<16x128xi1>, vector<16x128xf32>
    %c12_i32 = arith.constant 12 : i32
    %149 = tpu.dynamic_rotate %136 by %c12_i32 dim 0 : vector<16x128xf32>, i32 -> vector<16x128xf32>
    %c4_i32_70 = arith.constant 4 : i32
    %150 = vector.broadcast %c4_i32_70 : i32 to vector<16x128xi32>
    %151 = arith.addi %0, %150 : vector<16x128xi32>
    %c0_i32_71 = arith.constant 0 : i32
    %152 = vector.broadcast %c0_i32_71 : i32 to vector<16x128xi32>
    %153 = arith.cmpi sge, %151, %152 : vector<16x128xi32>
    %c4_i32_72 = arith.constant 4 : i32
    %154 = vector.broadcast %c4_i32_72 : i32 to vector<16x128xi32>
    %155 = arith.addi %0, %154 : vector<16x128xi32>
    %c16_i32_73 = arith.constant 16 : i32
    %156 = vector.broadcast %c16_i32_73 : i32 to vector<16x128xi32>
    %157 = arith.cmpi slt, %155, %156 : vector<16x128xi32>
    %158 = arith.andi %153, %157 : vector<16x128xi1>
    %cst_74 = arith.constant 0.000000e+00 : f32
    %159 = vector.broadcast %cst_74 : f32 to vector<16x128xf32>
    %160 = arith.select %158, %149, %159 : vector<16x128xi1>, vector<16x128xf32>
    %161 = tpu.concatenate %148, %136, %160 in 1 : vector<16x128xf32>, vector<16x128xf32>, vector<16x128xf32> -> vector<16x384xf32>
    %c4 = arith.constant 4 : index
    %c0_75 = arith.constant 0 : index
    %c0_76 = arith.constant 0 : index
    %162 = vector.load %arg2[%c4, %c0_75, %c0_76] : memref<6x384x128xf32, #tpu.memory_space<vmem>>, vector<1x384x128xf32>
    %163 = vector.shape_cast %162 : vector<1x384x128xf32> to vector<384x128xf32>
    %cst_77 = arith.constant dense<0.000000e+00> : vector<16x128xf32>
    %164 = tpu.matmul %161, %163, %cst_77 {dimension_numbers = #tpu.dot_dimension_numbers<[1], [0], [0], [1], [0, 0, 1, 1], [], []>} : vector<16x384xf32>, vector<384x128xf32>, vector<16x128xf32> -> vector<16x128xf32>
    %c4_78 = arith.constant 4 : index
    %c0_79 = arith.constant 0 : index
    %165 = vector.load %arg3[%c4_78, %c0_79] : memref<8x128xf32, #tpu.memory_space<vmem>>, vector<1x128xf32>
    %166 = vector.broadcast %165 : vector<1x128xf32> to vector<16x128xf32>
    %167 = arith.addf %164, %166 : vector<16x128xf32>
    %cst_80 = arith.constant 0.000000e+00 : f32
    %168 = vector.broadcast %cst_80 : f32 to vector<16x128xf32>
    %169 = arith.maximumf %167, %168 : vector<16x128xf32>
    %c4_i32_81 = arith.constant 4 : i32
    %170 = tpu.dynamic_rotate %169 by %c4_i32_81 dim 0 : vector<16x128xf32>, i32 -> vector<16x128xf32>
    %c-4_i32_82 = arith.constant -4 : i32
    %171 = vector.broadcast %c-4_i32_82 : i32 to vector<16x128xi32>
    %172 = arith.addi %0, %171 : vector<16x128xi32>
    %c0_i32_83 = arith.constant 0 : i32
    %173 = vector.broadcast %c0_i32_83 : i32 to vector<16x128xi32>
    %174 = arith.cmpi sge, %172, %173 : vector<16x128xi32>
    %c-4_i32_84 = arith.constant -4 : i32
    %175 = vector.broadcast %c-4_i32_84 : i32 to vector<16x128xi32>
    %176 = arith.addi %0, %175 : vector<16x128xi32>
    %c16_i32_85 = arith.constant 16 : i32
    %177 = vector.broadcast %c16_i32_85 : i32 to vector<16x128xi32>
    %178 = arith.cmpi slt, %176, %177 : vector<16x128xi32>
    %179 = arith.andi %174, %178 : vector<16x128xi1>
    %cst_86 = arith.constant 0.000000e+00 : f32
    %180 = vector.broadcast %cst_86 : f32 to vector<16x128xf32>
    %181 = arith.select %179, %170, %180 : vector<16x128xi1>, vector<16x128xf32>
    %c12_i32_87 = arith.constant 12 : i32
    %182 = tpu.dynamic_rotate %169 by %c12_i32_87 dim 0 : vector<16x128xf32>, i32 -> vector<16x128xf32>
    %c4_i32_88 = arith.constant 4 : i32
    %183 = vector.broadcast %c4_i32_88 : i32 to vector<16x128xi32>
    %184 = arith.addi %0, %183 : vector<16x128xi32>
    %c0_i32_89 = arith.constant 0 : i32
    %185 = vector.broadcast %c0_i32_89 : i32 to vector<16x128xi32>
    %186 = arith.cmpi sge, %184, %185 : vector<16x128xi32>
    %c4_i32_90 = arith.constant 4 : i32
    %187 = vector.broadcast %c4_i32_90 : i32 to vector<16x128xi32>
    %188 = arith.addi %0, %187 : vector<16x128xi32>
    %c16_i32_91 = arith.constant 16 : i32
    %189 = vector.broadcast %c16_i32_91 : i32 to vector<16x128xi32>
    %190 = arith.cmpi slt, %188, %189 : vector<16x128xi32>
    %191 = arith.andi %186, %190 : vector<16x128xi1>
    %cst_92 = arith.constant 0.000000e+00 : f32
    %192 = vector.broadcast %cst_92 : f32 to vector<16x128xf32>
    %193 = arith.select %191, %182, %192 : vector<16x128xi1>, vector<16x128xf32>
    %194 = tpu.concatenate %181, %169, %193 in 1 : vector<16x128xf32>, vector<16x128xf32>, vector<16x128xf32> -> vector<16x384xf32>
    %c5 = arith.constant 5 : index
    %c0_93 = arith.constant 0 : index
    %c0_94 = arith.constant 0 : index
    %195 = vector.load %arg2[%c5, %c0_93, %c0_94] : memref<6x384x128xf32, #tpu.memory_space<vmem>>, vector<1x384x128xf32>
    %196 = vector.shape_cast %195 : vector<1x384x128xf32> to vector<384x128xf32>
    %cst_95 = arith.constant dense<0.000000e+00> : vector<16x128xf32>
    %197 = tpu.matmul %194, %196, %cst_95 {dimension_numbers = #tpu.dot_dimension_numbers<[1], [0], [0], [1], [0, 0, 1, 1], [], []>} : vector<16x384xf32>, vector<384x128xf32>, vector<16x128xf32> -> vector<16x128xf32>
    %c5_96 = arith.constant 5 : index
    %c0_97 = arith.constant 0 : index
    %198 = vector.load %arg3[%c5_96, %c0_97] : memref<8x128xf32, #tpu.memory_space<vmem>>, vector<1x128xf32>
    %199 = vector.broadcast %198 : vector<1x128xf32> to vector<16x128xf32>
    %200 = arith.addf %197, %199 : vector<16x128xf32>
    %201 = arith.addf %200, %136 : vector<16x128xf32>
    %cst_98 = arith.constant 0.000000e+00 : f32
    %202 = vector.broadcast %cst_98 : f32 to vector<16x128xf32>
    %203 = arith.maximumf %201, %202 : vector<16x128xf32>
    %c0_99 = arith.constant 0 : index
    %c0_100 = arith.constant 0 : index
    %c0_101 = arith.constant 0 : index
    %204 = vector.load %arg4[%c0_99, %c0_100, %c0_101] : memref<1x16x128xf32, #tpu.memory_space<vmem>>, vector<1x16x128xf32>
    %205 = vector.shape_cast %204 : vector<1x16x128xf32> to vector<16x128xf32>
    %206 = vector.shape_cast %203 : vector<16x128xf32> to vector<1x16x128xf32>
    tpu.vector_store %arg4[%c0_99, %c0_100, %c0_101], %206 {strides = array<i32>} : memref<1x16x128xf32, #tpu.memory_space<vmem>>, vector<1x16x128xf32>,
    return
  }
  func.func @transform_0(%arg0: i32) -> (i32, i32, i32) {
    %c0_i32 = arith.constant 0 : i32
    %c0_i32_0 = arith.constant 0 : i32
    %c0_i32_1 = arith.constant 0 : i32
    return %arg0, %c0_i32, %c0_i32_0 : i32, i32, i32
  }
  func.func @transform_1(%arg0: i32) -> (i32, i32, i32) {
    %c0_i32 = arith.constant 0 : i32
    %c0_i32_0 = arith.constant 0 : i32
    %c0_i32_1 = arith.constant 0 : i32
    %c0_i32_2 = arith.constant 0 : i32
    return %c0_i32, %c0_i32_0, %c0_i32_1 : i32, i32, i32
  }
  func.func @transform_2(%arg0: i32) -> (i32, i32) {
    %c0_i32 = arith.constant 0 : i32
    %c0_i32_0 = arith.constant 0 : i32
    %c0_i32_1 = arith.constant 0 : i32
    return %c0_i32, %c0_i32_0 : i32, i32
  }
  func.func @transform_3(%arg0: i32) -> (i32, i32, i32) {
    %c0_i32 = arith.constant 0 : i32
    %c0_i32_0 = arith.constant 0 : i32
    %c0_i32_1 = arith.constant 0 : i32
    return %arg0, %c0_i32, %c0_i32_0 : i32, i32, i32
  }
}

</mosaic_0001>

<llo_original>
// kernel: tpu_custom_call.1
$region0: #{tpu_custom_call.1}
  #allocation0 [shape = 'u32[]', space=smem, size = 0x4, offset = 0x4, fixed_abs, tag = 'smem constant byte address 0x4 - core index']
  #allocation1 [shape = 'u32[144,128]{1,0:T(1,128)}', space=vmem, size = 0x12000, scoped, tag = 'internal scratch']
  %s0 = inlined_call_operand.hbm [shape: f32[2,16,128], index: 0, kind: input, shape index: {}]
  %s1 = inlined_call_operand.hbm [shape: f32[6,384,128], index: 1, kind: input, shape index: {}]
  %s2 = inlined_call_operand.hbm [shape: f32[8,128], index: 2, kind: input, shape index: {}]
  %s3 = inlined_call_operand.hbm [shape: f32[2,16,128], index: 3, kind: output, shape index: {}]
  %s4 = sld [smem:[#allocation0]]
  $region57: #{tpu_custom_call.1} parent=0
    _
  %s6 = ssub.s32 1, %s4
  %s7 = scalar_select 0, %s6, %s4
  $region1: #{tpu_custom_call.1} parent=0
    #allocation2 [shape = 'u8[16384]{0}', space=vmem, size = 0x4000, scoped, tag = 'input window, operand 0']
    #allocation3 [shape = 's32[2]{0}', space=sflag, size = 0x8, scoped, tag = 'scoped memory for tpu_custom_call.1']
    #allocation4 [shape = 's32[2]{0}', space=sflag, size = 0x8, scoped, tag = 'scoped memory for tpu_custom_call.1']
    #allocation5 [shape = 'u8[1179648]{0}', space=vmem, size = 0x120000, scoped, tag = 'input window, operand 1, single buffered']
    #allocation6 [shape = 's32[1]{0}', space=sflag, size = 0x4, scoped, tag = 'scoped memory for tpu_custom_call.1']
    #allocation7 [shape = 'u8[4096]{0}', space=vmem, size = 0x1000, scoped, tag = 'input window, operand 2, single buffered']
    #allocation8 [shape = 'u8[16384]{0}', space=vmem, size = 0x4000, scoped, tag = 'output window, operand 0']
    %8 = vsyncpa [#allocation3], 0
    %s9 = scalar_lea.sflag [#allocation3], 1
    %10 = vsyncpa %s9, 0
    %11 = vsyncpa [#allocation6], 0
    %12 = vsyncpa [#allocation4], 0
    %s13 = scalar_lea.sflag [#allocation4], 1
    %14 = vsyncpa %s13, 0
    loop: start=0, step=1, limit=4
    $region2: #{tpu_custom_call.1} parent=1 // loop_pre_header
      _
    $region3: #{tpu_custom_call.1} parent=1 // loop_header
      %s16 = sphi 0, %s20
      %p17 = scmp.ge.s32.totalorder %s16, 4
      %s26 = sphi 0, %s28
      %s29 = sphi 0, %s26
      %s30 = sphi 0, %s29
      %s46 = sphi 0, %s30
      %s50 = sphi 0, %s50
      %s52 = sphi 0, %s50
      %s53 = sphi 0, %s52
      %s67 = sphi 0, %s53
      %s71 = sphi 0, %s71
      %s73 = sphi 0, %s71
      %s74 = sphi 0, %s73
      %s88 = sphi 0, %s74
      %s94 = sphi 0, %s96
      %s97 = sphi 0, %s94
      %s98 = sphi 0, %s97
      %s114 = sphi 0, %s98
    $region4: #{tpu_custom_call.1} parent=1 // loop_header_branch
      %19 = sbr.rel (%p17) target = $region8
    $region5: #{tpu_custom_call.1} parent=1 // loop_body
      %s21 = ssub.s32 %s16, 1
      %s22 = ssub.s32 %s16, 2
      %s23 = sadd.s32 %s16, 1
      %s24 = ssub.s32 %s16, %s23
      %p25 = scmp.eq.s32.totalorder %s24, 0
      %s27 = sadd.s32 %s26, 1
      %s28 = scalar_select %p25, %s26, %s27
      %p31 = pneg %p25
      %p32 = scmp.eq.s32.totalorder %s16, 1
      %p33 = por %p31, %p32
      %p34 = scmp.ne.s32.totalorder %s26, %s29
      %p35 = scmp.eq.s32.totalorder %s16, 0
      %p36 = por %p34, %p35
      %p37 = scmp.ne.s32.totalorder %s26, %s29
      %p38 = scmp.eq.s32.totalorder %s21, 1
      %p39 = por %p37, %p38
      %p40 = scmp.ne.s32.totalorder %s29, %s30
      %p41 = scmp.eq.s32.totalorder %s21, 0
      %p42 = por %p40, %p41
      %p43 = scmp.ne.s32.totalorder %s29, %s30
      %p44 = scmp.eq.s32.totalorder %s22, 1
      %p45 = por %p43, %p44
      %p47 = scmp.ne.s32.totalorder %s30, %s46
      %p48 = scmp.eq.s32.totalorder %s22, 0
      %p49 = por %p47, %p48
      %s51 = sadd.s32 %s50, 1
      %p54 = scmp.eq.s32.totalorder %s16, 1
      %p55 = scmp.ne.s32.totalorder %s50, %s52
      %p56 = scmp.eq.s32.totalorder %s16, 0
      %p57 = por %p55, %p56
      %p58 = scmp.ne.s32.totalorder %s50, %s52
      %p59 = scmp.eq.s32.totalorder %s21, 1
      %p60 = por %p58, %p59
      %p61 = scmp.ne.s32.totalorder %s52, %s53
      %p62 = scmp.eq.s32.totalorder %s21, 0
      %p63 = por %p61, %p62
      %p64 = scmp.ne.s32.totalorder %s52, %s53
      %p65 = scmp.eq.s32.totalorder %s22, 1
      %p66 = por %p64, %p65
      %p68 = scmp.ne.s32.totalorder %s53, %s67
      %p69 = scmp.eq.s32.totalorder %s22, 0
      %p70 = por %p68, %p69
      %s72 = sadd.s32 %s71, 1
      %p75 = scmp.eq.s32.totalorder %s16, 1
      %p76 = scmp.ne.s32.totalorder %s71, %s73
      %p77 = scmp.eq.s32.totalorder %s16, 0
      %p78 = por %p76, %p77
      %p79 = scmp.ne.s32.totalorder %s71, %s73
      %p80 = scmp.eq.s32.totalorder %s21, 1
      %p81 = por %p79, %p80
      %p82 = scmp.ne.s32.totalorder %s73, %s74
      %p83 = scmp.eq.s32.totalorder %s21, 0
      %p84 = por %p82, %p83
      %p85 = scmp.ne.s32.totalorder %s73, %s74
      %p86 = scmp.eq.s32.totalorder %s22, 1
      %p87 = por %p85, %p86
      %p89 = scmp.ne.s32.totalorder %s74, %s88
      %p90 = scmp.eq.s32.totalorder %s22, 0
      %p91 = por %p89, %p90
      %s92 = ssub.s32 %s16, %s23
      %p93 = scmp.eq.s32.totalorder %s92, 0
      %s95 = sadd.s32 %s94, 1
      %s96 = scalar_select %p93, %s94, %s95
      %p99 = pneg %p93
      %p100 = scmp.eq.s32.totalorder %s16, 1
      %p101 = por %p99, %p100
      %p102 = scmp.ne.s32.totalorder %s94, %s97
      %p103 = scmp.eq.s32.totalorder %s16, 0
      %p104 = por %p102, %p103
      %p105 = scmp.ne.s32.totalorder %s94, %s97
      %p106 = scmp.eq.s32.totalorder %s21, 1
      %p107 = por %p105, %p106
      %p108 = scmp.ne.s32.totalorder %s97, %s98
      %p109 = scmp.eq.s32.totalorder %s21, 0
      %p110 = por %p108, %p109
      %p111 = scmp.ne.s32.totalorder %s97, %s98
      %p112 = scmp.eq.s32.totalorder %s22, 1
      %p113 = por %p111, %p112
      %p115 = scmp.ne.s32.totalorder %s98, %s114
      %p116 = scmp.eq.s32.totalorder %s22, 0
      %p117 = por %p115, %p116
      %p118 = scmp.le.s32.totalorder 1, %s16
      %p119 = scmp.lt.s32.totalorder %s16, 3
      %p120 = pnand %p118, %p119
      %p121 = pneg %p120
      // Predicated region
      $region9: #{tpu_custom_call.1} parent=5 // pred_check
        _
      $region10: #{tpu_custom_call.1} parent=5 // pred_check_branch
        %123 = sbr.rel (%p120) target = $region12
      $region11: #{tpu_custom_call.1} parent=5 // pred_region
        %s124 = ssub.s32 %s16, 1
        // Predicated region
        $region13: #{tpu_custom_call.1} parent=11 // pred_check
          %p125 = pneg %p63
        $region14: #{tpu_custom_call.1} parent=11 // pred_check_branch
          %127 = sbr.rel (%p125) target = $region16
        $region15: #{tpu_custom_call.1} parent=11 // pred_region
          %s129 = ssub.s32 36864, 36864
          %130 = vsyncadd [#allocation6], %s129
          %s131 = sshll.u32 [#allocation5], 4
          %s132 = int_to_ptr.vmem [resolvable:$true] %s131
          %137 = dma.hbm_to_vmem [thread:$0]  %s1, 36864, %s132, [#allocation6], 128, 128, 8
        $region16: #{tpu_custom_call.1} parent=11 // pred_fallthru
          _
        // Predicated region
        $region17: #{tpu_custom_call.1} parent=11 // pred_check
          %p138 = pneg %p84
        $region18: #{tpu_custom_call.1} parent=11 // pred_check_branch
          %140 = sbr.rel (%p138) target = $region20
        $region19: #{tpu_custom_call.1} parent=11 // pred_region
          %s142 = ssub.s32 128, 128
          %143 = vsyncadd [#allocation6], %s142
          %s145 = sshll.u32 [#allocation7], 4
          %s146 = int_to_ptr.vmem [resolvable:$true] %s145
          %148 = dma.hbm_to_vmem [thread:$0]  %s2, 128, %s146, [#allocation6]
        $region20: #{tpu_custom_call.1} parent=11 // pred_fallthru
          _
      $region12: #{tpu_custom_call.1} parent=5 // pred_fallthru
        _
      %p149 = scmp.lt.s32.totalorder %s16, 2
      // Predicated region
      $region21: #{tpu_custom_call.1} parent=5 // pred_check
        %p150 = pneg %p149
      $region22: #{tpu_custom_call.1} parent=5 // pred_check_branch
        %152 = sbr.rel (%p150) target = $region24
      $region23: #{tpu_custom_call.1} parent=5 // pred_region
        // Predicated region
        $region25: #{tpu_custom_call.1} parent=23 // pred_check
          %p153 = pneg %p36
        $region26: #{tpu_custom_call.1} parent=23 // pred_check_branch
          %155 = sbr.rel (%p153) target = $region28
        $region27: #{tpu_custom_call.1} parent=23 // pred_region
          %s156 = sand.u32 %s26, 1
          %s157 = scalar_lea.sflag [#allocation3], %s156
          %s158 = sand.u32 %s26, 1
          %s159 = smul.addr %s158, 16
          %s160 = scalar_lea.vmem [#allocation2], %s159
          %s162 = ssub.s32 256, 256
          %163 = vsyncadd %s157, %s162
          %s164 = smul.addr %s16, 2
          %s165 = smul.addr %s164, 128
          %s166 = scalar_lea.hbm %s0, %s165
          %s167 = sshll.u32 %s160, 4
          %s168 = int_to_ptr.vmem [resolvable:$true] %s167
          %173 = dma.hbm_to_vmem [thread:$0]  %s166, 256, %s168, %s157, 128, 128, 8
        $region28: #{tpu_custom_call.1} parent=23 // pred_fallthru
          _
      $region24: #{tpu_custom_call.1} parent=5 // pred_fallthru
        _
      %p174 = scmp.le.s32.totalorder 1, %s16
      %p175 = scmp.lt.s32.totalorder %s16, 3
      %p176 = pnand %p174, %p175
      %p177 = pneg %p176
      // Predicated region
      $region29: #{tpu_custom_call.1} parent=5 // pred_check
        _
      $region30: #{tpu_custom_call.1} parent=5 // pred_check_branch
        %179 = sbr.rel (%p176) target = $region32
      $region31: #{tpu_custom_call.1} parent=5 // pred_region
        %s180 = ssub.s32 %s16, 1
        %s181 = sand.u32 %s29, 1
        %s182 = scalar_lea.sflag [#allocation3], %s181
        %s183 = sand.u32 %s29, 1
        %s184 = smul.addr %s183, 16
        %s185 = scalar_lea.vmem [#allocation2], %s184
        // Predicated region
        $region33: #{tpu_custom_call.1} parent=31 // pred_check
          %p186 = pneg %p42
        $region34: #{tpu_custom_call.1} parent=31 // pred_check_branch
          %188 = sbr.rel (%p186) target = $region36
        $region35: #{tpu_custom_call.1} parent=31 // pred_region
          %189 = dma.done %s182, 256
        $region36: #{tpu_custom_call.1} parent=31 // pred_fallthru
          _
        // Predicated region
        $region37: #{tpu_custom_call.1} parent=31 // pred_check
          %p190 = pneg %p63
        $region38: #{tpu_custom_call.1} parent=31 // pred_check_branch
          %192 = sbr.rel (%p190) target = $region40
        $region39: #{tpu_custom_call.1} parent=31 // pred_region
          %193 = dma.done [#allocation6], 36864
        $region40: #{tpu_custom_call.1} parent=31 // pred_fallthru
          _
        // Predicated region
        $region41: #{tpu_custom_call.1} parent=31 // pred_check
          %p194 = pneg %p84
        $region42: #{tpu_custom_call.1} parent=31 // pred_check_branch
          %196 = sbr.rel (%p194) target = $region44
        $region43: #{tpu_custom_call.1} parent=31 // pred_region
          %197 = dma.done [#allocation6], 128
        $region44: #{tpu_custom_call.1} parent=31 // pred_fallthru
          _
        %s198 = sand.u32 %s29, 1
        %s199 = scalar_lea.sflag [#allocation3], %s198
        %s200 = sand.u32 %s29, 1
        %s201 = smul.addr %s200, 16
        %s202 = scalar_lea.vmem [#allocation2], %s201
        %p203 = pneg %p42
        %p204 = pneg %p39
        %p205 = pneg %p63
        %p206 = pneg %p60
        %p207 = pneg %p84
        %p208 = pneg %p81
        %p209 = pneg %p110
        %p210 = pneg %p107
        %s211 = sand.u32 %s97, 1
        %s212 = scalar_lea.sflag [#allocation4], %s211
        %s213 = sand.u32 %s97, 1
        %s214 = smul.addr %s213, 16
        %s215 = scalar_lea.vmem [#allocation8], %s214
        %v216 = vlaneseq
        %v217 = vshrl.u32 %v216, 7
        %v218 = vadd.s32 %v217, 8
        %v219 = vld [vmem:[%s185] sm:$0xff]
        %v220 = vld [vmem:[%s185 + $0x8] sm:$0xff]
        %v221 = vrot.slane %v219, 7
        %v222 = vrot.slane %v220, 7
        %vm223 = vcmp.lt.s32.totalorder %v217, 1
        %v224 = vsel %vm223, %v221, %v222
        %v225 = vsel %vm223, %v222, %v221
        %v226 = vadd.s32 %v217, 4294967295
        %v227 = vadd.s32 %v218, 4294967295
        %vm228 = vcmp.ge.s32.totalorder %v226, 0
        %vm229 = vcmp.ge.s32.totalorder %v227, 0
        %vm230 = vcmp.lt.s32.totalorder %v226, 16
        %vm231 = vcmp.lt.s32.totalorder %v227, 16
        %vm232 = vmand %vm228, %vm230
        %vm233 = vmand %vm229, %vm231
        %v234 = vsel %vm232, %v225, 0.0
        %v235 = vsel %vm233, %v224, 0.0
        %v236 = vrot.slane %v219, 1
        %v237 = vrot.slane %v220, 1
        %vm238 = vcmp.lt.s32.totalorder %v217, 7
        %v239 = vsel %vm238, %v236, %v237
        %v240 = vsel %vm238, %v237, %v236
        %v241 = vadd.s32 %v217, 1
        %v242 = vadd.s32 %v218, 1
        %vm243 = vcmp.ge.s32.totalorder %v241, 0
        %vm244 = vcmp.ge.s32.totalorder %v242, 0
        %vm245 = vcmp.lt.s32.totalorder %v241, 16
        %vm246 = vcmp.lt.s32.totalorder %v242, 16
        %vm247 = vmand %vm243, %vm245
        %vm248 = vmand %vm244, %vm246
        %v249 = vsel %vm247, %v239, 0.0
        %v250 = vsel %vm248, %v240, 0.0
        %v251 = vld [vmem:[#allocation5] sm:$0xff]
        %v252 = vld [vmem:[#allocation5 + $0x8] sm:$0xff]
        %v253 = vld [vmem:[#allocation5 + $0x10] sm:$0xff]
        %v254 = vld [vmem:[#allocation5 + $0x18] sm:$0xff]
        %v255 = vld [vmem:[#allocation5 + $0x20] sm:$0xff]
        %v256 = vld [vmem:[#allocation5 + $0x28] sm:$0xff]
        %v257 = vld [vmem:[#allocation5 + $0x30] sm:$0xff]
        %v258 = vld [vmem:[#allocation5 + $0x38] sm:$0xff]
        %v259 = vld [vmem:[#allocation5 + $0x40] sm:$0xff]
        %v260 = vld [vmem:[#allocation5 + $0x48] sm:$0xff]
        %v261 = vld [vmem:[#allocation5 + $0x50] sm:$0xff]
        %v262 = vld [vmem:[#allocation5 + $0x58] sm:$0xff]
        %v263 = vld [vmem:[#allocation5 + $0x60] sm:$0xff]
        %v264 = vld [vmem:[#allocation5 + $0x68] sm:$0xff]
        %v265 = vld [vmem:[#allocation5 + $0x70] sm:$0xff]
        %v266 = vld [vmem:[#allocation5 + $0x78] sm:$0xff]
        %v267 = vld [vmem:[#allocation5 + $0x80] sm:$0xff]
        %v268 = vld [vmem:[#allocation5 + $0x88] sm:$0xff]
        %v269 = vld [vmem:[#allocation5 + $0x90] sm:$0xff]
        %v270 = vld [vmem:[#allocation5 + $0x98] sm:$0xff]
        %v271 = vld [vmem:[#allocation5 + $0xa0] sm:$0xff]
        %v272 = vld [vmem:[#allocation5 + $0xa8] sm:$0xff]
        %v273 = vld [vmem:[#allocation5 + $0xb0] sm:$0xff]
        %v274 = vld [vmem:[#allocation5 + $0xb8] sm:$0xff]
        %v275 = vld [vmem:[#allocation5 + $0xc0] sm:$0xff]
        %v276 = vld [vmem:[#allocation5 + $0xc8] sm:$0xff]
        %v277 = vld [vmem:[#allocation5 + $0xd0] sm:$0xff]
        %v278 = vld [vmem:[#allocation5 + $0xd8] sm:$0xff]
        %v279 = vld [vmem:[#allocation5 + $0xe0] sm:$0xff]
        %v280 = vld [vmem:[#allocation5 + $0xe8] sm:$0xff]
        %v281 = vld [vmem:[#allocation5 + $0xf0] sm:$0xff]
        %v282 = vld [vmem:[#allocation5 + $0xf8] sm:$0xff]
        %v283 = vld [vmem:[#allocation5 + $0x100] sm:$0xff]
        %v284 = vld [vmem:[#allocation5 + $0x108] sm:$0xff]
        %v285 = vld [vmem:[#allocation5 + $0x110] sm:$0xff]
        %v286 = vld [vmem:[#allocation5 + $0x118] sm:$0xff]
        %v287 = vld [vmem:[#allocation5 + $0x120] sm:$0xff]
        %v288 = vld [vmem:[#allocation5 + $0x128] sm:$0xff]
        %v289 = vld [vmem:[#allocation5 + $0x130] sm:$0xff]
        %v290 = vld [vmem:[#allocation5 + $0x138] sm:$0xff]
        %v291 = vld [vmem:[#allocation5 + $0x140] sm:$0xff]
        %v292 = vld [vmem:[#allocation5 + $0x148] sm:$0xff]
        %v293 = vld [vmem:[#allocation5 + $0x150] sm:$0xff]
        %v294 = vld [vmem:[#allocation5 + $0x158] sm:$0xff]
        %v295 = vld [vmem:[#allocation5 + $0x160] sm:$0xff]
        %v296 = vld [vmem:[#allocation5 + $0x168] sm:$0xff]
        %v297 = vld [vmem:[#allocation5 + $0x170] sm:$0xff]
        %v298 = vld [vmem:[#allocation5 + $0x178] sm:$0xff]
        %v299 = vld [vmem:[#allocation7] sm:$0x1]
        %v300 = vlaneseq
        %v301 = vshrl.u32 %v300, 7
        %v302 = vsub.s32 0, %v301
        %v303 = vrot.slane %v299, %v302
        %304 = vmatprep.subr.mxu0 0.0
        %305 = vmatpush1.msra.mxu0 %v266
        %306 = vmatprep.subr.mxu0 0.0
        %307 = vmatpush1.msra.mxu0 %v265
        %308 = vmatprep.subr.mxu0 0.0
        %309 = vmatpush1.msra.mxu0 %v264
        %310 = vmatprep.subr.mxu0 0.0
        %311 = vmatpush1.msra.mxu0 %v263
        %312 = vmatprep.subr.mxu0 0.0
        %313 = vmatpush1.msra.mxu0 %v262
        %314 = vmatprep.subr.mxu0 0.0
        %315 = vmatpush1.msra.mxu0 %v261
        %316 = vmatprep.subr.mxu0 0.0
        %317 = vmatpush1.msra.mxu0 %v260
        %318 = vmatprep.subr.mxu0 0.0
        %319 = vmatpush1.msra.mxu0 %v259
        %320 = vmatprep.subr.mxu0 0.0
        %321 = vmatpush1.msra.mxu0 %v258
        %322 = vmatprep.subr.mxu0 0.0
        %323 = vmatpush1.msra.mxu0 %v257
        %324 = vmatprep.subr.mxu0 0.0
        %325 = vmatpush1.msra.mxu0 %v256
        %326 = vmatprep.subr.mxu0 0.0
        %327 = vmatpush1.msra.mxu0 %v255
        %328 = vmatprep.subr.mxu0 0.0
        %329 = vmatpush1.msra.mxu0 %v254
        %330 = vmatprep.subr.mxu0 0.0
        %331 = vmatpush1.msra.mxu0 %v253
        %332 = vmatprep.subr.mxu0 0.0
        %333 = vmatpush1.msra.mxu0 %v252
        %334 = vmatprep.subr.mxu0 0.0
        %335 = vmatpush1.msra.mxu0 %v251
        %336 = vmatprep.subr.mxu0 0.0
        %337 = vmatpush2.msra.mxu0 %v282
        %338 = vmatprep.subr.mxu0 0.0
        %339 = vmatpush2.msra.mxu0 %v281
        %340 = vmatprep.subr.mxu0 0.0
        %341 = vmatpush2.msra.mxu0 %v280
        %342 = vmatprep.subr.mxu0 0.0
        %343 = vmatpush2.msra.mxu0 %v279
        %344 = vmatprep.subr.mxu0 0.0
        %345 = vmatpush2.msra.mxu0 %v278
        %346 = vmatprep.subr.mxu0 0.0
        %347 = vmatpush2.msra.mxu0 %v277
        %348 = vmatprep.subr.mxu0 0.0
        %349 = vmatpush2.msra.mxu0 %v276
        %350 = vmatprep.subr.mxu0 0.0
        %351 = vmatpush2.msra.mxu0 %v275
        %352 = vmatprep.subr.mxu0 0.0
        %353 = vmatpush2.msra.mxu0 %v274
        %354 = vmatprep.subr.mxu0 0.0
        %355 = vmatpush2.msra.mxu0 %v273
        %356 = vmatprep.subr.mxu0 0.0
        %357 = vmatpush2.msra.mxu0 %v272
        %358 = vmatprep.subr.mxu0 0.0
        %359 = vmatpush2.msra.mxu0 %v271
        %360 = vmatprep.subr.mxu0 0.0
        %361 = vmatpush2.msra.mxu0 %v270
        %362 = vmatprep.subr.mxu0 0.0
        %363 = vmatpush2.msra.mxu0 %v269
        %364 = vmatprep.subr.mxu0 0.0
        %365 = vmatpush2.msra.mxu0 %v268
        %366 = vmatprep.subr.mxu0 0.0
        %367 = vmatpush2.msra.mxu0 %v267
        %368 = vmatprep.mubr.f32.mxu0 %v219
        %369 = vmatmul.mubr.f32.gmra.mxu0 %v234
        %v370 = vpop.f32.mrf.mxu0
        %v371 = vadd.f32 %v303, %v370
        %v372 = vpop.f32.mrf.mxu0
        %373 = vmatprep.mubr.f32.mxu0 %v220
        %374 = vmatmul.mubr.f32.gmra.mxu0 %v235
        %v375 = vpop.f32.mrf.mxu0
        %v376 = vadd.f32 %v303, %v375
        %v377 = vpop.f32.mrf.mxu0
        %378 = vdwg.mxu0
        %379 = vmatprep.subr.mxu0 0.0
        %380 = vmatpush1.msra.mxu0 %v298
        %381 = vmatprep.subr.mxu0 0.0
        %382 = vmatpush1.msra.mxu0 %v297
        %383 = vmatprep.subr.mxu0 0.0
        %384 = vmatpush1.msra.mxu0 %v296
        %385 = vmatprep.subr.mxu0 0.0
        %386 = vmatpush1.msra.mxu0 %v295
        %387 = vmatprep.subr.mxu0 0.0
        %388 = vmatpush1.msra.mxu0 %v294
        %389 = vmatprep.subr.mxu0 0.0
        %390 = vmatpush1.msra.mxu0 %v293
        %391 = vmatprep.subr.mxu0 0.0
        %392 = vmatpush1.msra.mxu0 %v292
        %393 = vmatprep.subr.mxu0 0.0
        %394 = vmatpush1.msra.mxu0 %v291
        %395 = vmatprep.subr.mxu0 0.0
        %396 = vmatpush1.msra.mxu0 %v290
        %397 = vmatprep.subr.mxu0 0.0
        %398 = vmatpush1.msra.mxu0 %v289
        %399 = vmatprep.subr.mxu0 0.0
        %400 = vmatpush1.msra.mxu0 %v288
        %401 = vmatprep.subr.mxu0 0.0
        %402 = vmatpush1.msra.mxu0 %v287
        %403 = vmatprep.subr.mxu0 0.0
        %404 = vmatpush1.msra.mxu0 %v286
        %405 = vmatprep.subr.mxu0 0.0
        %406 = vmatpush1.msra.mxu0 %v285
        %407 = vmatprep.subr.mxu0 0.0
        %408 = vmatpush1.msra.mxu0 %v284
        %409 = vmatprep.subr.mxu0 0.0
        %410 = vmatpush1.msra.mxu0 %v283
        %411 = vmatprep.subr.mxu0 0.0
        %412 = vmatpush2.msra.mxu0 0.0
        %413 = vmatprep.subr.mxu0 0.0
        %414 = vmatpush2.msra.mxu0 0.0
        %415 = vmatprep.subr.mxu0 0.0
        %416 = vmatpush2.msra.mxu0 0.0
        %417 = vmatprep.subr.mxu0 0.0
        %418 = vmatpush2.msra.mxu0 0.0
        %419 = vmatprep.subr.mxu0 0.0
        %420 = vmatpush2.msra.mxu0 0.0
        %421 = vmatprep.subr.mxu0 0.0
        %422 = vmatpush2.msra.mxu0 0.0
        %423 = vmatprep.subr.mxu0 0.0
        %424 = vmatpush2.msra.mxu0 0.0
        %425 = vmatprep.subr.mxu0 0.0
        %426 = vmatpush2.msra.mxu0 0.0
        %427 = vmatprep.subr.mxu0 0.0
        %428 = vmatpush2.msra.mxu0 0.0
        %429 = vmatprep.subr.mxu0 0.0
        %430 = vmatpush2.msra.mxu0 0.0
        %431 = vmatprep.subr.mxu0 0.0
        %432 = vmatpush2.msra.mxu0 0.0
        %433 = vmatprep.subr.mxu0 0.0
        %434 = vmatpush2.msra.mxu0 0.0
        %435 = vmatprep.subr.mxu0 0.0
        %436 = vmatpush2.msra.mxu0 0.0
        %437 = vmatprep.subr.mxu0 0.0
        %438 = vmatpush2.msra.mxu0 0.0
        %439 = vmatprep.subr.mxu0 0.0
        %440 = vmatpush2.msra.mxu0 0.0
        %441 = vmatprep.subr.mxu0 0.0
        %442 = vmatpush2.msra.mxu0 0.0
        %443 = vmatprep.mubr.f32.mxu0 0.0
        %444 = vmatmul.mubr.f32.gmra.mxu0 %v249
        %v445 = vpop.f32.mrf.mxu0
        %v446 = vadd.f32 %v371, %v445
        %v447 = vpop.f32.mrf.mxu0
        %448 = vmatprep.mubr.f32.mxu0 0.0
        %449 = vmatmul.mubr.f32.gmra.mxu0 %v250
        %v450 = vpop.f32.mrf.mxu0
        %v451 = vadd.f32 %v376, %v450
        %v452 = vpop.f32.mrf.mxu0
        %453 = vdwg.mxu0
        %v454 = vmax.f32 %v446, 0.0
        %v455 = vmax.f32 %v451, 0.0
        %v456 = vrot.slane %v454, 7
        %v457 = vrot.slane %v455, 7
        %v458 = vsel %vm223, %v456, %v457
        %v459 = vsel %vm223, %v457, %v456
        %v460 = vsel %vm232, %v459, 0.0
        %v461 = vsel %vm233, %v458, 0.0
        %v462 = vrot.slane %v454, 1
        %v463 = vrot.slane %v455, 1
        %v464 = vsel %vm238, %v462, %v463
        %v465 = vsel %vm238, %v463, %v462
        %v466 = vsel %vm247, %v464, 0.0
        %v467 = vsel %vm248, %v465, 0.0
        %s468 = scalar_lea.vmem [#allocation5], 384
        %v469 = vld [vmem:[%s468] sm:$0xff]
        %v470 = vld [vmem:[%s468 + $0x8] sm:$0xff]
        %v471 = vld [vmem:[%s468 + $0x10] sm:$0xff]
        %v472 = vld [vmem:[%s468 + $0x18] sm:$0xff]
        %v473 = vld [vmem:[%s468 + $0x20] sm:$0xff]
        %v474 = vld [vmem:[%s468 + $0x28] sm:$0xff]
        %v475 = vld [vmem:[%s468 + $0x30] sm:$0xff]
        %v476 = vld [vmem:[%s468 + $0x38] sm:$0xff]
        %v477 = vld [vmem:[%s468 + $0x40] sm:$0xff]
        %v478 = vld [vmem:[%s468 + $0x48] sm:$0xff]
        %v479 = vld [vmem:[%s468 + $0x50] sm:$0xff]
        %v480 = vld [vmem:[%s468 + $0x58] sm:$0xff]
        %v481 = vld [vmem:[%s468 + $0x60] sm:$0xff]
        %v482 = vld [vmem:[%s468 + $0x68] sm:$0xff]
        %v483 = vld [vmem:[%s468 + $0x70] sm:$0xff]
        %v484 = vld [vmem:[%s468 + $0x78] sm:$0xff]
        %v485 = vld [vmem:[%s468 + $0x80] sm:$0xff]
        %v486 = vld [vmem:[%s468 + $0x88] sm:$0xff]
        %v487 = vld [vmem:[%s468 + $0x90] sm:$0xff]
        %v488 = vld [vmem:[%s468 + $0x98] sm:$0xff]
        %v489 = vld [vmem:[%s468 + $0xa0] sm:$0xff]
        %v490 = vld [vmem:[%s468 + $0xa8] sm:$0xff]
        %v491 = vld [vmem:[%s468 + $0xb0] sm:$0xff]
        %v492 = vld [vmem:[%s468 + $0xb8] sm:$0xff]
        %v493 = vld [vmem:[%s468 + $0xc0] sm:$0xff]
        %v494 = vld [vmem:[%s468 + $0xc8] sm:$0xff]
        %v495 = vld [vmem:[%s468 + $0xd0] sm:$0xff]
        %v496 = vld [vmem:[%s468 + $0xd8] sm:$0xff]
        %v497 = vld [vmem:[%s468 + $0xe0] sm:$0xff]
        %v498 = vld [vmem:[%s468 + $0xe8] sm:$0xff]
        %v499 = vld [vmem:[%s468 + $0xf0] sm:$0xff]
        %v500 = vld [vmem:[%s468 + $0xf8] sm:$0xff]
        %v501 = vld [vmem:[%s468 + $0x100] sm:$0xff]
        %v502 = vld [vmem:[%s468 + $0x108] sm:$0xff]
        %v503 = vld [vmem:[%s468 + $0x110] sm:$0xff]
        %v504 = vld [vmem:[%s468 + $0x118] sm:$0xff]
        %v505 = vld [vmem:[%s468 + $0x120] sm:$0xff]
        %v506 = vld [vmem:[%s468 + $0x128] sm:$0xff]
        %v507 = vld [vmem:[%s468 + $0x130] sm:$0xff]
        %v508 = vld [vmem:[%s468 + $0x138] sm:$0xff]
        %v509 = vld [vmem:[%s468 + $0x140] sm:$0xff]
        %v510 = vld [vmem:[%s468 + $0x148] sm:$0xff]
        %v511 = vld [vmem:[%s468 + $0x150] sm:$0xff]
        %v512 = vld [vmem:[%s468 + $0x158] sm:$0xff]
        %v513 = vld [vmem:[%s468 + $0x160] sm:$0xff]
        %v514 = vld [vmem:[%s468 + $0x168] sm:$0xff]
        %v515 = vld [vmem:[%s468 + $0x170] sm:$0xff]
        %v516 = vld [vmem:[%s468 + $0x178] sm:$0xff]
        %v517 = vld [vmem:[#allocation7 + $0x1] sm:$0x1]
        %v518 = vlaneseq
        %v519 = vshrl.u32 %v518, 7
        %v520 = vsub.s32 0, %v519
        %v521 = vrot.slane %v517, %v520
        %522 = vmatprep.subr.mxu0 0.0
        %523 = vmatpush1.msra.mxu0 %v484
        %524 = vmatprep.subr.mxu0 0.0
        %525 = vmatpush1.msra.mxu0 %v483
        %526 = vmatprep.subr.mxu0 0.0
        %527 = vmatpush1.msra.mxu0 %v482
        %528 = vmatprep.subr.mxu0 0.0
        %529 = vmatpush1.msra.mxu0 %v481
        %530 = vmatprep.subr.mxu0 0.0
        %531 = vmatpush1.msra.mxu0 %v480
        %532 = vmatprep.subr.mxu0 0.0
        %533 = vmatpush1.msra.mxu0 %v479
        %534 = vmatprep.subr.mxu0 0.0
        %535 = vmatpush1.msra.mxu0 %v478
        %536 = vmatprep.subr.mxu0 0.0
        %537 = vmatpush1.msra.mxu0 %v477
        %538 = vmatprep.subr.mxu0 0.0
        %539 = vmatpush1.msra.mxu0 %v476
        %540 = vmatprep.subr.mxu0 0.0
        %541 = vmatpush1.msra.mxu0 %v475
        %542 = vmatprep.subr.mxu0 0.0
        %543 = vmatpush1.msra.mxu0 %v474
        %544 = vmatprep.subr.mxu0 0.0
        %545 = vmatpush1.msra.mxu0 %v473
        %546 = vmatprep.subr.mxu0 0.0
        %547 = vmatpush1.msra.mxu0 %v472
        %548 = vmatprep.subr.mxu0 0.0
        %549 = vmatpush1.msra.mxu0 %v471
        %550 = vmatprep.subr.mxu0 0.0
        %551 = vmatpush1.msra.mxu0 %v470
        %552 = vmatprep.subr.mxu0 0.0
        %553 = vmatpush1.msra.mxu0 %v469
        %554 = vmatprep.subr.mxu0 0.0
        %555 = vmatpush2.msra.mxu0 %v500
        %556 = vmatprep.subr.mxu0 0.0
        %557 = vmatpush2.msra.mxu0 %v499
        %558 = vmatprep.subr.mxu0 0.0
        %559 = vmatpush2.msra.mxu0 %v498
        %560 = vmatprep.subr.mxu0 0.0
        %561 = vmatpush2.msra.mxu0 %v497
        %562 = vmatprep.subr.mxu0 0.0
        %563 = vmatpush2.msra.mxu0 %v496
        %564 = vmatprep.subr.mxu0 0.0
        %565 = vmatpush2.msra.mxu0 %v495
        %566 = vmatprep.subr.mxu0 0.0
        %567 = vmatpush2.msra.mxu0 %v494
        %568 = vmatprep.subr.mxu0 0.0
        %569 = vmatpush2.msra.mxu0 %v493
        %570 = vmatprep.subr.mxu0 0.0
        %571 = vmatpush2.msra.mxu0 %v492
        %572 = vmatprep.subr.mxu0 0.0
        %573 = vmatpush2.msra.mxu0 %v491
        %574 = vmatprep.subr.mxu0 0.0
        %575 = vmatpush2.msra.mxu0 %v490
        %576 = vmatprep.subr.mxu0 0.0
        %577 = vmatpush2.msra.mxu0 %v489
        %578 = vmatprep.subr.mxu0 0.0
        %579 = vmatpush2.msra.mxu0 %v488
        %580 = vmatprep.subr.mxu0 0.0
        %581 = vmatpush2.msra.mxu0 %v487
        %582 = vmatprep.subr.mxu0 0.0
        %583 = vmatpush2.msra.mxu0 %v486
        %584 = vmatprep.subr.mxu0 0.0
        %585 = vmatpush2.msra.mxu0 %v485
        %586 = vmatprep.mubr.f32.mxu0 %v454
        %587 = vmatmul.mubr.f32.gmra.mxu0 %v460
        %v588 = vpop.f32.mrf.mxu0
        %v589 = vadd.f32 %v521, %v588
        %v590 = vpop.f32.mrf.mxu0
        %591 = vmatprep.mubr.f32.mxu0 %v455
        %592 = vmatmul.mubr.f32.gmra.mxu0 %v461
        %v593 = vpop.f32.mrf.mxu0
        %v594 = vadd.f32 %v521, %v593
        %v595 = vpop.f32.mrf.mxu0
        %596 = vdwg.mxu0
        %597 = vmatprep.subr.mxu0 0.0
        %598 = vmatpush1.msra.mxu0 %v516
        %599 = vmatprep.subr.mxu0 0.0
        %600 = vmatpush1.msra.mxu0 %v515
        %601 = vmatprep.subr.mxu0 0.0
        %602 = vmatpush1.msra.mxu0 %v514
        %603 = vmatprep.subr.mxu0 0.0
        %604 = vmatpush1.msra.mxu0 %v513
        %605 = vmatprep.subr.mxu0 0.0
        %606 = vmatpush1.msra.mxu0 %v512
        %607 = vmatprep.subr.mxu0 0.0
        %608 = vmatpush1.msra.mxu0 %v511
        %609 = vmatprep.subr.mxu0 0.0
        %610 = vmatpush1.msra.mxu0 %v510
        %611 = vmatprep.subr.mxu0 0.0
        %612 = vmatpush1.msra.mxu0 %v509
        %613 = vmatprep.subr.mxu0 0.0
        %614 = vmatpush1.msra.mxu0 %v508
        %615 = vmatprep.subr.mxu0 0.0
        %616 = vmatpush1.msra.mxu0 %v507
        %617 = vmatprep.subr.mxu0 0.0
        %618 = vmatpush1.msra.mxu0 %v506
        %619 = vmatprep.subr.mxu0 0.0
        %620 = vmatpush1.msra.mxu0 %v505
        %621 = vmatprep.subr.mxu0 0.0
        %622 = vmatpush1.msra.mxu0 %v504
        %623 = vmatprep.subr.mxu0 0.0
        %624 = vmatpush1.msra.mxu0 %v503
        %625 = vmatprep.subr.mxu0 0.0
        %626 = vmatpush1.msra.mxu0 %v502
        %627 = vmatprep.subr.mxu0 0.0
        %628 = vmatpush1.msra.mxu0 %v501
        %629 = vmatprep.subr.mxu0 0.0
        %630 = vmatpush2.msra.mxu0 0.0
        %631 = vmatprep.subr.mxu0 0.0
        %632 = vmatpush2.msra.mxu0 0.0
        %633 = vmatprep.subr.mxu0 0.0
        %634 = vmatpush2.msra.mxu0 0.0
        %635 = vmatprep.subr.mxu0 0.0
        %636 = vmatpush2.msra.mxu0 0.0
        %637 = vmatprep.subr.mxu0 0.0
        %638 = vmatpush2.msra.mxu0 0.0
        %639 = vmatprep.subr.mxu0 0.0
        %640 = vmatpush2.msra.mxu0 0.0
        %641 = vmatprep.subr.mxu0 0.0
        %642 = vmatpush2.msra.mxu0 0.0
        %643 = vmatprep.subr.mxu0 0.0
        %644 = vmatpush2.msra.mxu0 0.0
        %645 = vmatprep.subr.mxu0 0.0
        %646 = vmatpush2.msra.mxu0 0.0
        %647 = vmatprep.subr.mxu0 0.0
        %648 = vmatpush2.msra.mxu0 0.0
        %649 = vmatprep.subr.mxu0 0.0
        %650 = vmatpush2.msra.mxu0 0.0
        %651 = vmatprep.subr.mxu0 0.0
        %652 = vmatpush2.msra.mxu0 0.0
        %653 = vmatprep.subr.mxu0 0.0
        %654 = vmatpush2.msra.mxu0 0.0
        %655 = vmatprep.subr.mxu0 0.0
        %656 = vmatpush2.msra.mxu0 0.0
        %657 = vmatprep.subr.mxu0 0.0
        %658 = vmatpush2.msra.mxu0 0.0
        %659 = vmatprep.subr.mxu0 0.0
        %660 = vmatpush2.msra.mxu0 0.0
        %661 = vmatprep.mubr.f32.mxu0 0.0
        %662 = vmatmul.mubr.f32.gmra.mxu0 %v466
        %v663 = vpop.f32.mrf.mxu0
        %v664 = vadd.f32 %v589, %v663
        %v665 = vpop.f32.mrf.mxu0
        %666 = vmatprep.mubr.f32.mxu0 0.0
        %667 = vmatmul.mubr.f32.gmra.mxu0 %v467
        %v668 = vpop.f32.mrf.mxu0
        %v669 = vadd.f32 %v594, %v668
        %v670 = vpop.f32.mrf.mxu0
        %671 = vdwg.mxu0
        %v672 = vadd.f32 %v664, %v219
        %v673 = vadd.f32 %v669, %v220
        %v674 = vmax.f32 %v672, 0.0
        %v675 = vmax.f32 %v673, 0.0
        %v676 = vrot.slane %v674, 6
        %v677 = vrot.slane %v675, 6
        %vm678 = vcmp.lt.s32.totalorder %v217, 2
        %v679 = vsel %vm678, %v676, %v677
        %v680 = vsel %vm678, %v677, %v676
        %v681 = vadd.s32 %v217, 4294967294
        %v682 = vadd.s32 %v218, 4294967294
        %vm683 = vcmp.ge.s32.totalorder %v681, 0
        %vm684 = vcmp.ge.s32.totalorder %v682, 0
        %vm685 = vcmp.lt.s32.totalorder %v681, 16
        %vm686 = vcmp.lt.s32.totalorder %v682, 16
        %vm687 = vmand %vm683, %vm685
        %vm688 = vmand %vm684, %vm686
        %v689 = vsel %vm687, %v680, 0.0
        %v690 = vsel %vm688, %v679, 0.0
        %v691 = vrot.slane %v674, 2
        %v692 = vrot.slane %v675, 2
        %vm693 = vcmp.lt.s32.totalorder %v217, 6
        %v694 = vsel %vm693, %v691, %v692
        %v695 = vsel %vm693, %v692, %v691
        %v696 = vadd.s32 %v217, 2
        %v697 = vadd.s32 %v218, 2
        %vm698 = vcmp.ge.s32.totalorder %v696, 0
        %vm699 = vcmp.ge.s32.totalorder %v697, 0
        %vm700 = vcmp.lt.s32.totalorder %v696, 16
        %vm701 = vcmp.lt.s32.totalorder %v697, 16
        %vm702 = vmand %vm698, %vm700
        %vm703 = vmand %vm699, %vm701
        %v704 = vsel %vm702, %v694, 0.0
        %v705 = vsel %vm703, %v695, 0.0
        %s706 = scalar_lea.vmem [#allocation5], 768
        %v707 = vld [vmem:[%s706] sm:$0xff]
        %v708 = vld [vmem:[%s706 + $0x8] sm:$0xff]
        %v709 = vld [vmem:[%s706 + $0x10] sm:$0xff]
        %v710 = vld [vmem:[%s706 + $0x18] sm:$0xff]
        %v711 = vld [vmem:[%s706 + $0x20] sm:$0xff]
        %v712 = vld [vmem:[%s706 + $0x28] sm:$0xff]
        %v713 = vld [vmem:[%s706 + $0x30] sm:$0xff]
        %v714 = vld [vmem:[%s706 + $0x38] sm:$0xff]
        %v715 = vld [vmem:[%s706 + $0x40] sm:$0xff]
        %v716 = vld [vmem:[%s706 + $0x48] sm:$0xff]
        %v717 = vld [vmem:[%s706 + $0x50] sm:$0xff]
        %v718 = vld [vmem:[%s706 + $0x58] sm:$0xff]
        %v719 = vld [vmem:[%s706 + $0x60] sm:$0xff]
        %v720 = vld [vmem:[%s706 + $0x68] sm:$0xff]
        %v721 = vld [vmem:[%s706 + $0x70] sm:$0xff]
        %v722 = vld [vmem:[%s706 + $0x78] sm:$0xff]
        %v723 = vld [vmem:[%s706 + $0x80] sm:$0xff]
        %v724 = vld [vmem:[%s706 + $0x88] sm:$0xff]
        %v725 = vld [vmem:[%s706 + $0x90] sm:$0xff]
        %v726 = vld [vmem:[%s706 + $0x98] sm:$0xff]
        %v727 = vld [vmem:[%s706 + $0xa0] sm:$0xff]
        %v728 = vld [vmem:[%s706 + $0xa8] sm:$0xff]
        %v729 = vld [vmem:[%s706 + $0xb0] sm:$0xff]
        %v730 = vld [vmem:[%s706 + $0xb8] sm:$0xff]
        %v731 = vld [vmem:[%s706 + $0xc0] sm:$0xff]
        %v732 = vld [vmem:[%s706 + $0xc8] sm:$0xff]
        %v733 = vld [vmem:[%s706 + $0xd0] sm:$0xff]
        %v734 = vld [vmem:[%s706 + $0xd8] sm:$0xff]
        %v735 = vld [vmem:[%s706 + $0xe0] sm:$0xff]
        %v736 = vld [vmem:[%s706 + $0xe8] sm:$0xff]
        %v737 = vld [vmem:[%s706 + $0xf0] sm:$0xff]
        %v738 = vld [vmem:[%s706 + $0xf8] sm:$0xff]
        %v739 = vld [vmem:[%s706 + $0x100] sm:$0xff]
        %v740 = vld [vmem:[%s706 + $0x108] sm:$0xff]
        %v741 = vld [vmem:[%s706 + $0x110] sm:$0xff]
        %v742 = vld [vmem:[%s706 + $0x118] sm:$0xff]
        %v743 = vld [vmem:[%s706 + $0x120] sm:$0xff]
        %v744 = vld [vmem:[%s706 + $0x128] sm:$0xff]
        %v745 = vld [vmem:[%s706 + $0x130] sm:$0xff]
        %v746 = vld [vmem:[%s706 + $0x138] sm:$0xff]
        %v747 = vld [vmem:[%s706 + $0x140] sm:$0xff]
        %v748 = vld [vmem:[%s706 + $0x148] sm:$0xff]
        %v749 = vld [vmem:[%s706 + $0x150] sm:$0xff]
        %v750 = vld [vmem:[%s706 + $0x158] sm:$0xff]
        %v751 = vld [vmem:[%s706 + $0x160] sm:$0xff]
        %v752 = vld [vmem:[%s706 + $0x168] sm:$0xff]
        %v753 = vld [vmem:[%s706 + $0x170] sm:$0xff]
        %v754 = vld [vmem:[%s706 + $0x178] sm:$0xff]
        %v755 = vld [vmem:[#allocation7 + $0x2] sm:$0x1]
        %v756 = vlaneseq
        %v757 = vshrl.u32 %v756, 7
        %v758 = vsub.s32 0, %v757
        %v759 = vrot.slane %v755, %v758
        %760 = vmatprep.subr.mxu0 0.0
        %761 = vmatpush1.msra.mxu0 %v722
        %762 = vmatprep.subr.mxu0 0.0
        %763 = vmatpush1.msra.mxu0 %v721
        %764 = vmatprep.subr.mxu0 0.0
        %765 = vmatpush1.msra.mxu0 %v720
        %766 = vmatprep.subr.mxu0 0.0
        %767 = vmatpush1.msra.mxu0 %v719
        %768 = vmatprep.subr.mxu0 0.0
        %769 = vmatpush1.msra.mxu0 %v718
        %770 = vmatprep.subr.mxu0 0.0
        %771 = vmatpush1.msra.mxu0 %v717
        %772 = vmatprep.subr.mxu0 0.0
        %773 = vmatpush1.msra.mxu0 %v716
        %774 = vmatprep.subr.mxu0 0.0
        %775 = vmatpush1.msra.mxu0 %v715
        %776 = vmatprep.subr.mxu0 0.0
        %777 = vmatpush1.msra.mxu0 %v714
        %778 = vmatprep.subr.mxu0 0.0
        %779 = vmatpush1.msra.mxu0 %v713
        %780 = vmatprep.subr.mxu0 0.0
        %781 = vmatpush1.msra.mxu0 %v712
        %782 = vmatprep.subr.mxu0 0.0
        %783 = vmatpush1.msra.mxu0 %v711
        %784 = vmatprep.subr.mxu0 0.0
        %785 = vmatpush1.msra.mxu0 %v710
        %786 = vmatprep.subr.mxu0 0.0
        %787 = vmatpush1.msra.mxu0 %v709
        %788 = vmatprep.subr.mxu0 0.0
        %789 = vmatpush1.msra.mxu0 %v708
        %790 = vmatprep.subr.mxu0 0.0
        %791 = vmatpush1.msra.mxu0 %v707
        %792 = vmatprep.subr.mxu0 0.0
        %793 = vmatpush2.msra.mxu0 %v738
        %794 = vmatprep.subr.mxu0 0.0
        %795 = vmatpush2.msra.mxu0 %v737
        %796 = vmatprep.subr.mxu0 0.0
        %797 = vmatpush2.msra.mxu0 %v736
        %798 = vmatprep.subr.mxu0 0.0
        %799 = vmatpush2.msra.mxu0 %v735
        %800 = vmatprep.subr.mxu0 0.0
        %801 = vmatpush2.msra.mxu0 %v734
        %802 = vmatprep.subr.mxu0 0.0
        %803 = vmatpush2.msra.mxu0 %v733
        %804 = vmatprep.subr.mxu0 0.0
        %805 = vmatpush2.msra.mxu0 %v732
        %806 = vmatprep.subr.mxu0 0.0
        %807 = vmatpush2.msra.mxu0 %v731
        %808 = vmatprep.subr.mxu0 0.0
        %809 = vmatpush2.msra.mxu0 %v730
        %810 = vmatprep.subr.mxu0 0.0
        %811 = vmatpush2.msra.mxu0 %v729
        %812 = vmatprep.subr.mxu0 0.0
        %813 = vmatpush2.msra.mxu0 %v728
        %814 = vmatprep.subr.mxu0 0.0
        %815 = vmatpush2.msra.mxu0 %v727
        %816 = vmatprep.subr.mxu0 0.0
        %817 = vmatpush2.msra.mxu0 %v726
        %818 = vmatprep.subr.mxu0 0.0
        %819 = vmatpush2.msra.mxu0 %v725
        %820 = vmatprep.subr.mxu0 0.0
        %821 = vmatpush2.msra.mxu0 %v724
        %822 = vmatprep.subr.mxu0 0.0
        %823 = vmatpush2.msra.mxu0 %v723
        %824 = vmatprep.mubr.f32.mxu0 %v674
        %825 = vmatmul.mubr.f32.gmra.mxu0 %v689
        %v826 = vpop.f32.mrf.mxu0
        %v827 = vadd.f32 %v759, %v826
        %v828 = vpop.f32.mrf.mxu0
        %829 = vmatprep.mubr.f32.mxu0 %v675
        %830 = vmatmul.mubr.f32.gmra.mxu0 %v690
        %v831 = vpop.f32.mrf.mxu0
        %v832 = vadd.f32 %v759, %v831
        %v833 = vpop.f32.mrf.mxu0
        %834 = vdwg.mxu0
        %835 = vmatprep.subr.mxu0 0.0
        %836 = vmatpush1.msra.mxu0 %v754
        %837 = vmatprep.subr.mxu0 0.0
        %838 = vmatpush1.msra.mxu0 %v753
        %839 = vmatprep.subr.mxu0 0.0
        %840 = vmatpush1.msra.mxu0 %v752
        %841 = vmatprep.subr.mxu0 0.0
        %842 = vmatpush1.msra.mxu0 %v751
        %843 = vmatprep.subr.mxu0 0.0
        %844 = vmatpush1.msra.mxu0 %v750
        %845 = vmatprep.subr.mxu0 0.0
        %846 = vmatpush1.msra.mxu0 %v749
        %847 = vmatprep.subr.mxu0 0.0
        %848 = vmatpush1.msra.mxu0 %v748
        %849 = vmatprep.subr.mxu0 0.0
        %850 = vmatpush1.msra.mxu0 %v747
        %851 = vmatprep.subr.mxu0 0.0
        %852 = vmatpush1.msra.mxu0 %v746
        %853 = vmatprep.subr.mxu0 0.0
        %854 = vmatpush1.msra.mxu0 %v745
        %855 = vmatprep.subr.mxu0 0.0
        %856 = vmatpush1.msra.mxu0 %v744
        %857 = vmatprep.subr.mxu0 0.0
        %858 = vmatpush1.msra.mxu0 %v743
        %859 = vmatprep.subr.mxu0 0.0
        %860 = vmatpush1.msra.mxu0 %v742
        %861 = vmatprep.subr.mxu0 0.0
        %862 = vmatpush1.msra.mxu0 %v741
        %863 = vmatprep.subr.mxu0 0.0
        %864 = vmatpush1.msra.mxu0 %v740
        %865 = vmatprep.subr.mxu0 0.0
        %866 = vmatpush1.msra.mxu0 %v739
        %867 = vmatprep.subr.mxu0 0.0
        %868 = vmatpush2.msra.mxu0 0.0
        %869 = vmatprep.subr.mxu0 0.0
        %870 = vmatpush2.msra.mxu0 0.0
        %871 = vmatprep.subr.mxu0 0.0
        %872 = vmatpush2.msra.mxu0 0.0
        %873 = vmatprep.subr.mxu0 0.0
        %874 = vmatpush2.msra.mxu0 0.0
        %875 = vmatprep.subr.mxu0 0.0
        %876 = vmatpush2.msra.mxu0 0.0
        %877 = vmatprep.subr.mxu0 0.0
        %878 = vmatpush2.msra.mxu0 0.0
        %879 = vmatprep.subr.mxu0 0.0
        %880 = vmatpush2.msra.mxu0 0.0
        %881 = vmatprep.subr.mxu0 0.0
        %882 = vmatpush2.msra.mxu0 0.0
        %883 = vmatprep.subr.mxu0 0.0
        %884 = vmatpush2.msra.mxu0 0.0
        %885 = vmatprep.subr.mxu0 0.0
        %886 = vmatpush2.msra.mxu0 0.0
        %887 = vmatprep.subr.mxu0 0.0
        %888 = vmatpush2.msra.mxu0 0.0
        %889 = vmatprep.subr.mxu0 0.0
        %890 = vmatpush2.msra.mxu0 0.0
        %891 = vmatprep.subr.mxu0 0.0
        %892 = vmatpush2.msra.mxu0 0.0
        %893 = vmatprep.subr.mxu0 0.0
        %894 = vmatpush2.msra.mxu0 0.0
        %895 = vmatprep.subr.mxu0 0.0
        %896 = vmatpush2.msra.mxu0 0.0
        %897 = vmatprep.subr.mxu0 0.0
        %898 = vmatpush2.msra.mxu0 0.0
        %899 = vmatprep.mubr.f32.mxu0 0.0
        %900 = vmatmul.mubr.f32.gmra.mxu0 %v704
        %v901 = vpop.f32.mrf.mxu0
        %v902 = vadd.f32 %v827, %v901
        %v903 = vpop.f32.mrf.mxu0
        %904 = vmatprep.mubr.f32.mxu0 0.0
        %905 = vmatmul.mubr.f32.gmra.mxu0 %v705
        %v906 = vpop.f32.mrf.mxu0
        %v907 = vadd.f32 %v832, %v906
        %v908 = vpop.f32.mrf.mxu0
        %909 = vdwg.mxu0
        %v910 = vmax.f32 %v902, 0.0
        %v911 = vmax.f32 %v907, 0.0
        %v912 = vrot.slane %v910, 6
        %v913 = vrot.slane %v911, 6
        %v914 = vsel %vm678, %v912, %v913
        %v915 = vsel %vm678, %v913, %v912
        %v916 = vsel %vm687, %v915, 0.0
        %v917 = vsel %vm688, %v914, 0.0
        %v918 = vrot.slane %v910, 2
        %v919 = vrot.slane %v911, 2
        %v920 = vsel %vm693, %v918, %v919
        %v921 = vsel %vm693, %v919, %v918
        %v922 = vsel %vm702, %v920, 0.0
        %v923 = vsel %vm703, %v921, 0.0
        %s924 = scalar_lea.vmem [#allocation5], 1152
        %v925 = vld [vmem:[%s924] sm:$0xff]
        %v926 = vld [vmem:[%s924 + $0x8] sm:$0xff]
        %v927 = vld [vmem:[%s924 + $0x10] sm:$0xff]
        %v928 = vld [vmem:[%s924 + $0x18] sm:$0xff]
        %v929 = vld [vmem:[%s924 + $0x20] sm:$0xff]
        %v930 = vld [vmem:[%s924 + $0x28] sm:$0xff]
        %v931 = vld [vmem:[%s924 + $0x30] sm:$0xff]
        %v932 = vld [vmem:[%s924 + $0x38] sm:$0xff]
        %v933 = vld [vmem:[%s924 + $0x40] sm:$0xff]
        %v934 = vld [vmem:[%s924 + $0x48] sm:$0xff]
        %v935 = vld [vmem:[%s924 + $0x50] sm:$0xff]
        %v936 = vld [vmem:[%s924 + $0x58] sm:$0xff]
        %v937 = vld [vmem:[%s924 + $0x60] sm:$0xff]
        %v938 = vld [vmem:[%s924 + $0x68] sm:$0xff]
        %v939 = vld [vmem:[%s924 + $0x70] sm:$0xff]
        %v940 = vld [vmem:[%s924 + $0x78] sm:$0xff]
        %v941 = vld [vmem:[%s924 + $0x80] sm:$0xff]
        %v942 = vld [vmem:[%s924 + $0x88] sm:$0xff]
        %v943 = vld [vmem:[%s924 + $0x90] sm:$0xff]
        %v944 = vld [vmem:[%s924 + $0x98] sm:$0xff]
        %v945 = vld [vmem:[%s924 + $0xa0] sm:$0xff]
        %v946 = vld [vmem:[%s924 + $0xa8] sm:$0xff]
        %v947 = vld [vmem:[%s924 + $0xb0] sm:$0xff]
        %v948 = vld [vmem:[%s924 + $0xb8] sm:$0xff]
        %v949 = vld [vmem:[%s924 + $0xc0] sm:$0xff]
        %v950 = vld [vmem:[%s924 + $0xc8] sm:$0xff]
        %v951 = vld [vmem:[%s924 + $0xd0] sm:$0xff]
        %v952 = vld [vmem:[%s924 + $0xd8] sm:$0xff]
        %v953 = vld [vmem:[%s924 + $0xe0] sm:$0xff]
        %v954 = vld [vmem:[%s924 + $0xe8] sm:$0xff]
        %v955 = vld [vmem:[%s924 + $0xf0] sm:$0xff]
        %v956 = vld [vmem:[%s924 + $0xf8] sm:$0xff]
        %v957 = vld [vmem:[%s924 + $0x100] sm:$0xff]
        %v958 = vld [vmem:[%s924 + $0x108] sm:$0xff]
        %v959 = vld [vmem:[%s924 + $0x110] sm:$0xff]
        %v960 = vld [vmem:[%s924 + $0x118] sm:$0xff]
        %v961 = vld [vmem:[%s924 + $0x120] sm:$0xff]
        %v962 = vld [vmem:[%s924 + $0x128] sm:$0xff]
        %v963 = vld [vmem:[%s924 + $0x130] sm:$0xff]
        %v964 = vld [vmem:[%s924 + $0x138] sm:$0xff]
        %v965 = vld [vmem:[%s924 + $0x140] sm:$0xff]
        %v966 = vld [vmem:[%s924 + $0x148] sm:$0xff]
        %v967 = vld [vmem:[%s924 + $0x150] sm:$0xff]
        %v968 = vld [vmem:[%s924 + $0x158] sm:$0xff]
        %v969 = vld [vmem:[%s924 + $0x160] sm:$0xff]
        %v970 = vld [vmem:[%s924 + $0x168] sm:$0xff]
        %v971 = vld [vmem:[%s924 + $0x170] sm:$0xff]
        %v972 = vld [vmem:[%s924 + $0x178] sm:$0xff]
        %v973 = vld [vmem:[#allocation7 + $0x3] sm:$0x1]
        %v974 = vlaneseq
        %v975 = vshrl.u32 %v974, 7
        %v976 = vsub.s32 0, %v975
        %v977 = vrot.slane %v973, %v976
        %978 = vmatprep.subr.mxu0 0.0
        %979 = vmatpush1.msra.mxu0 %v940
        %980 = vmatprep.subr.mxu0 0.0
        %981 = vmatpush1.msra.mxu0 %v939
        %982 = vmatprep.subr.mxu0 0.0
        %983 = vmatpush1.msra.mxu0 %v938
        %984 = vmatprep.subr.mxu0 0.0
        %985 = vmatpush1.msra.mxu0 %v937
        %986 = vmatprep.subr.mxu0 0.0
        %987 = vmatpush1.msra.mxu0 %v936
        %988 = vmatprep.subr.mxu0 0.0
        %989 = vmatpush1.msra.mxu0 %v935
        %990 = vmatprep.subr.mxu0 0.0
        %991 = vmatpush1.msra.mxu0 %v934
        %992 = vmatprep.subr.mxu0 0.0
        %993 = vmatpush1.msra.mxu0 %v933
        %994 = vmatprep.subr.mxu0 0.0
        %995 = vmatpush1.msra.mxu0 %v932
        %996 = vmatprep.subr.mxu0 0.0
        %997 = vmatpush1.msra.mxu0 %v931
        %998 = vmatprep.subr.mxu0 0.0
        %999 = vmatpush1.msra.mxu0 %v930
        %1000 = vmatprep.subr.mxu0 0.0
        %1001 = vmatpush1.msra.mxu0 %v929
        %1002 = vmatprep.subr.mxu0 0.0
        %1003 = vmatpush1.msra.mxu0 %v928
        %1004 = vmatprep.subr.mxu0 0.0
        %1005 = vmatpush1.msra.mxu0 %v927
        %1006 = vmatprep.subr.mxu0 0.0
        %1007 = vmatpush1.msra.mxu0 %v926
        %1008 = vmatprep.subr.mxu0 0.0
        %1009 = vmatpush1.msra.mxu0 %v925
        %1010 = vmatprep.subr.mxu0 0.0
        %1011 = vmatpush2.msra.mxu0 %v956
        %1012 = vmatprep.subr.mxu0 0.0
        %1013 = vmatpush2.msra.mxu0 %v955
        %1014 = vmatprep.subr.mxu0 0.0
        %1015 = vmatpush2.msra.mxu0 %v954
        %1016 = vmatprep.subr.mxu0 0.0
        %1017 = vmatpush2.msra.mxu0 %v953
        %1018 = vmatprep.subr.mxu0 0.0
        %1019 = vmatpush2.msra.mxu0 %v952
        %1020 = vmatprep.subr.mxu0 0.0
        %1021 = vmatpush2.msra.mxu0 %v951
        %1022 = vmatprep.subr.mxu0 0.0
        %1023 = vmatpush2.msra.mxu0 %v950
        %1024 = vmatprep.subr.mxu0 0.0
        %1025 = vmatpush2.msra.mxu0 %v949
        %1026 = vmatprep.subr.mxu0 0.0
        %1027 = vmatpush2.msra.mxu0 %v948
        %1028 = vmatprep.subr.mxu0 0.0
        %1029 = vmatpush2.msra.mxu0 %v947
        %1030 = vmatprep.subr.mxu0 0.0
        %1031 = vmatpush2.msra.mxu0 %v946
        %1032 = vmatprep.subr.mxu0 0.0
        %1033 = vmatpush2.msra.mxu0 %v945
        %1034 = vmatprep.subr.mxu0 0.0
        %1035 = vmatpush2.msra.mxu0 %v944
        %1036 = vmatprep.subr.mxu0 0.0
        %1037 = vmatpush2.msra.mxu0 %v943
        %1038 = vmatprep.subr.mxu0 0.0
        %1039 = vmatpush2.msra.mxu0 %v942
        %1040 = vmatprep.subr.mxu0 0.0
        %1041 = vmatpush2.msra.mxu0 %v941
        %1042 = vmatprep.mubr.f32.mxu0 %v910
        %1043 = vmatmul.mubr.f32.gmra.mxu0 %v916
        %v1044 = vpop.f32.mrf.mxu0
        %v1045 = vadd.f32 %v977, %v1044
        %v1046 = vpop.f32.mrf.mxu0
        %1047 = vmatprep.mubr.f32.mxu0 %v911
        %1048 = vmatmul.mubr.f32.gmra.mxu0 %v917
        %v1049 = vpop.f32.mrf.mxu0
        %v1050 = vadd.f32 %v977, %v1049
        %v1051 = vpop.f32.mrf.mxu0
        %1052 = vdwg.mxu0
        %1053 = vmatprep.subr.mxu0 0.0
        %1054 = vmatpush1.msra.mxu0 %v972
        %1055 = vmatprep.subr.mxu0 0.0
        %1056 = vmatpush1.msra.mxu0 %v971
        %1057 = vmatprep.subr.mxu0 0.0
        %1058 = vmatpush1.msra.mxu0 %v970
        %1059 = vmatprep.subr.mxu0 0.0
        %1060 = vmatpush1.msra.mxu0 %v969
        %1061 = vmatprep.subr.mxu0 0.0
        %1062 = vmatpush1.msra.mxu0 %v968
        %1063 = vmatprep.subr.mxu0 0.0
        %1064 = vmatpush1.msra.mxu0 %v967
        %1065 = vmatprep.subr.mxu0 0.0
        %1066 = vmatpush1.msra.mxu0 %v966
        %1067 = vmatprep.subr.mxu0 0.0
        %1068 = vmatpush1.msra.mxu0 %v965
        %1069 = vmatprep.subr.mxu0 0.0
        %1070 = vmatpush1.msra.mxu0 %v964
        %1071 = vmatprep.subr.mxu0 0.0
        %1072 = vmatpush1.msra.mxu0 %v963
        %1073 = vmatprep.subr.mxu0 0.0
        %1074 = vmatpush1.msra.mxu0 %v962
        %1075 = vmatprep.subr.mxu0 0.0
        %1076 = vmatpush1.msra.mxu0 %v961
        %1077 = vmatprep.subr.mxu0 0.0
        %1078 = vmatpush1.msra.mxu0 %v960
        %1079 = vmatprep.subr.mxu0 0.0
        %1080 = vmatpush1.msra.mxu0 %v959
        %1081 = vmatprep.subr.mxu0 0.0
        %1082 = vmatpush1.msra.mxu0 %v958
        %1083 = vmatprep.subr.mxu0 0.0
        %1084 = vmatpush1.msra.mxu0 %v957
        %1085 = vmatprep.subr.mxu0 0.0
        %1086 = vmatpush2.msra.mxu0 0.0
        %1087 = vmatprep.subr.mxu0 0.0
        %1088 = vmatpush2.msra.mxu0 0.0
        %1089 = vmatprep.subr.mxu0 0.0
        %1090 = vmatpush2.msra.mxu0 0.0
        %1091 = vmatprep.subr.mxu0 0.0
        %1092 = vmatpush2.msra.mxu0 0.0
        %1093 = vmatprep.subr.mxu0 0.0
        %1094 = vmatpush2.msra.mxu0 0.0
        %1095 = vmatprep.subr.mxu0 0.0
        %1096 = vmatpush2.msra.mxu0 0.0
        %1097 = vmatprep.subr.mxu0 0.0
        %1098 = vmatpush2.msra.mxu0 0.0
        %1099 = vmatprep.subr.mxu0 0.0
        %1100 = vmatpush2.msra.mxu0 0.0
        %1101 = vmatprep.subr.mxu0 0.0
        %1102 = vmatpush2.msra.mxu0 0.0
        %1103 = vmatprep.subr.mxu0 0.0
        %1104 = vmatpush2.msra.mxu0 0.0
        %1105 = vmatprep.subr.mxu0 0.0
        %1106 = vmatpush2.msra.mxu0 0.0
        %1107 = vmatprep.subr.mxu0 0.0
        %1108 = vmatpush2.msra.mxu0 0.0
        %1109 = vmatprep.subr.mxu0 0.0
        %1110 = vmatpush2.msra.mxu0 0.0
        %1111 = vmatprep.subr.mxu0 0.0
        %1112 = vmatpush2.msra.mxu0 0.0
        %1113 = vmatprep.subr.mxu0 0.0
        %1114 = vmatpush2.msra.mxu0 0.0
        %1115 = vmatprep.subr.mxu0 0.0
        %1116 = vmatpush2.msra.mxu0 0.0
        %1117 = vmatprep.mubr.f32.mxu0 0.0
        %1118 = vmatmul.mubr.f32.gmra.mxu0 %v922
        %v1119 = vpop.f32.mrf.mxu0
        %v1120 = vadd.f32 %v1045, %v1119
        %v1121 = vpop.f32.mrf.mxu0
        %1122 = vmatprep.mubr.f32.mxu0 0.0
        %1123 = vmatmul.mubr.f32.gmra.mxu0 %v923
        %v1124 = vpop.f32.mrf.mxu0
        %v1125 = vadd.f32 %v1050, %v1124
        %v1126 = vpop.f32.mrf.mxu0
        %1127 = vdwg.mxu0
        %v1128 = vadd.f32 %v1120, %v674
        %v1129 = vadd.f32 %v1125, %v675
        %v1130 = vmax.f32 %v1128, 0.0
        %v1131 = vmax.f32 %v1129, 0.0
        %v1132 = vrot.slane %v1130, 4
        %v1133 = vrot.slane %v1131, 4
        %vm1134 = vcmp.lt.s32.totalorder %v217, 4
        %v1135 = vsel %vm1134, %v1132, %v1133
        %v1136 = vsel %vm1134, %v1133, %v1132
        %v1137 = vadd.s32 %v217, 4294967292
        %v1138 = vadd.s32 %v218, 4294967292
        %vm1139 = vcmp.ge.s32.totalorder %v1137, 0
        %vm1140 = vcmp.ge.s32.totalorder %v1138, 0
        %vm1141 = vcmp.lt.s32.totalorder %v1137, 16
        %vm1142 = vcmp.lt.s32.totalorder %v1138, 16
        %vm1143 = vmand %vm1139, %vm1141
        %vm1144 = vmand %vm1140, %vm1142
        %v1145 = vsel %vm1143, %v1136, 0.0
        %v1146 = vsel %vm1144, %v1135, 0.0
        %v1147 = vadd.s32 %v217, 4
        %v1148 = vadd.s32 %v218, 4
        %vm1149 = vcmp.ge.s32.totalorder %v1147, 0
        %vm1150 = vcmp.ge.s32.totalorder %v1148, 0
        %vm1151 = vcmp.lt.s32.totalorder %v1147, 16
        %vm1152 = vcmp.lt.s32.totalorder %v1148, 16
        %vm1153 = vmand %vm1149, %vm1151
        %vm1154 = vmand %vm1150, %vm1152
        %v1155 = vsel %vm1153, %v1135, 0.0
        %v1156 = vsel %vm1154, %v1136, 0.0
        %s1157 = scalar_lea.vmem [#allocation5], 1536
        %v1158 = vld [vmem:[%s1157] sm:$0xff]
        %v1159 = vld [vmem:[%s1157 + $0x8] sm:$0xff]
        %v1160 = vld [vmem:[%s1157 + $0x10] sm:$0xff]
        %v1161 = vld [vmem:[%s1157 + $0x18] sm:$0xff]
        %v1162 = vld [vmem:[%s1157 + $0x20] sm:$0xff]
        %v1163 = vld [vmem:[%s1157 + $0x28] sm:$0xff]
        %v1164 = vld [vmem:[%s1157 + $0x30] sm:$0xff]
        %v1165 = vld [vmem:[%s1157 + $0x38] sm:$0xff]
        %v1166 = vld [vmem:[%s1157 + $0x40] sm:$0xff]
        %v1167 = vld [vmem:[%s1157 + $0x48] sm:$0xff]
        %v1168 = vld [vmem:[%s1157 + $0x50] sm:$0xff]
        %v1169 = vld [vmem:[%s1157 + $0x58] sm:$0xff]
        %v1170 = vld [vmem:[%s1157 + $0x60] sm:$0xff]
        %v1171 = vld [vmem:[%s1157 + $0x68] sm:$0xff]
        %v1172 = vld [vmem:[%s1157 + $0x70] sm:$0xff]
        %v1173 = vld [vmem:[%s1157 + $0x78] sm:$0xff]
        %v1174 = vld [vmem:[%s1157 + $0x80] sm:$0xff]
        %v1175 = vld [vmem:[%s1157 + $0x88] sm:$0xff]
        %v1176 = vld [vmem:[%s1157 + $0x90] sm:$0xff]
        %v1177 = vld [vmem:[%s1157 + $0x98] sm:$0xff]
        %v1178 = vld [vmem:[%s1157 + $0xa0] sm:$0xff]
        %v1179 = vld [vmem:[%s1157 + $0xa8] sm:$0xff]
        %v1180 = vld [vmem:[%s1157 + $0xb0] sm:$0xff]
        %v1181 = vld [vmem:[%s1157 + $0xb8] sm:$0xff]
        %v1182 = vld [vmem:[%s1157 + $0xc0] sm:$0xff]
        %v1183 = vld [vmem:[%s1157 + $0xc8] sm:$0xff]
        %v1184 = vld [vmem:[%s1157 + $0xd0] sm:$0xff]
        %v1185 = vld [vmem:[%s1157 + $0xd8] sm:$0xff]
        %v1186 = vld [vmem:[%s1157 + $0xe0] sm:$0xff]
        %v1187 = vld [vmem:[%s1157 + $0xe8] sm:$0xff]
        %v1188 = vld [vmem:[%s1157 + $0xf0] sm:$0xff]
        %v1189 = vld [vmem:[%s1157 + $0xf8] sm:$0xff]
        %v1190 = vld [vmem:[%s1157 + $0x100] sm:$0xff]
        %v1191 = vld [vmem:[%s1157 + $0x108] sm:$0xff]
        %v1192 = vld [vmem:[%s1157 + $0x110] sm:$0xff]
        %v1193 = vld [vmem:[%s1157 + $0x118] sm:$0xff]
        %v1194 = vld [vmem:[%s1157 + $0x120] sm:$0xff]
        %v1195 = vld [vmem:[%s1157 + $0x128] sm:$0xff]
        %v1196 = vld [vmem:[%s1157 + $0x130] sm:$0xff]
        %v1197 = vld [vmem:[%s1157 + $0x138] sm:$0xff]
        %v1198 = vld [vmem:[%s1157 + $0x140] sm:$0xff]
        %v1199 = vld [vmem:[%s1157 + $0x148] sm:$0xff]
        %v1200 = vld [vmem:[%s1157 + $0x150] sm:$0xff]
        %v1201 = vld [vmem:[%s1157 + $0x158] sm:$0xff]
        %v1202 = vld [vmem:[%s1157 + $0x160] sm:$0xff]
        %v1203 = vld [vmem:[%s1157 + $0x168] sm:$0xff]
        %v1204 = vld [vmem:[%s1157 + $0x170] sm:$0xff]
        %v1205 = vld [vmem:[%s1157 + $0x178] sm:$0xff]
        %v1206 = vld [vmem:[#allocation7 + $0x4] sm:$0x1]
        %v1207 = vlaneseq
        %v1208 = vshrl.u32 %v1207, 7
        %v1209 = vsub.s32 0, %v1208
        %v1210 = vrot.slane %v1206, %v1209
        %1211 = vmatprep.subr.mxu0 0.0
        %1212 = vmatpush1.msra.mxu0 %v1173
        %1213 = vmatprep.subr.mxu0 0.0
        %1214 = vmatpush1.msra.mxu0 %v1172
        %1215 = vmatprep.subr.mxu0 0.0
        %1216 = vmatpush1.msra.mxu0 %v1171
        %1217 = vmatprep.subr.mxu0 0.0
        %1218 = vmatpush1.msra.mxu0 %v1170
        %1219 = vmatprep.subr.mxu0 0.0
        %1220 = vmatpush1.msra.mxu0 %v1169
        %1221 = vmatprep.subr.mxu0 0.0
        %1222 = vmatpush1.msra.mxu0 %v1168
        %1223 = vmatprep.subr.mxu0 0.0
        %1224 = vmatpush1.msra.mxu0 %v1167
        %1225 = vmatprep.subr.mxu0 0.0
        %1226 = vmatpush1.msra.mxu0 %v1166
        %1227 = vmatprep.subr.mxu0 0.0
        %1228 = vmatpush1.msra.mxu0 %v1165
        %1229 = vmatprep.subr.mxu0 0.0
        %1230 = vmatpush1.msra.mxu0 %v1164
        %1231 = vmatprep.subr.mxu0 0.0
        %1232 = vmatpush1.msra.mxu0 %v1163
        %1233 = vmatprep.subr.mxu0 0.0
        %1234 = vmatpush1.msra.mxu0 %v1162
        %1235 = vmatprep.subr.mxu0 0.0
        %1236 = vmatpush1.msra.mxu0 %v1161
        %1237 = vmatprep.subr.mxu0 0.0
        %1238 = vmatpush1.msra.mxu0 %v1160
        %1239 = vmatprep.subr.mxu0 0.0
        %1240 = vmatpush1.msra.mxu0 %v1159
        %1241 = vmatprep.subr.mxu0 0.0
        %1242 = vmatpush1.msra.mxu0 %v1158
        %1243 = vmatprep.subr.mxu0 0.0
        %1244 = vmatpush2.msra.mxu0 %v1189
        %1245 = vmatprep.subr.mxu0 0.0
        %1246 = vmatpush2.msra.mxu0 %v1188
        %1247 = vmatprep.subr.mxu0 0.0
        %1248 = vmatpush2.msra.mxu0 %v1187
        %1249 = vmatprep.subr.mxu0 0.0
        %1250 = vmatpush2.msra.mxu0 %v1186
        %1251 = vmatprep.subr.mxu0 0.0
        %1252 = vmatpush2.msra.mxu0 %v1185
        %1253 = vmatprep.subr.mxu0 0.0
        %1254 = vmatpush2.msra.mxu0 %v1184
        %1255 = vmatprep.subr.mxu0 0.0
        %1256 = vmatpush2.msra.mxu0 %v1183
        %1257 = vmatprep.subr.mxu0 0.0
        %1258 = vmatpush2.msra.mxu0 %v1182
        %1259 = vmatprep.subr.mxu0 0.0
        %1260 = vmatpush2.msra.mxu0 %v1181
        %1261 = vmatprep.subr.mxu0 0.0
        %1262 = vmatpush2.msra.mxu0 %v1180
        %1263 = vmatprep.subr.mxu0 0.0
        %1264 = vmatpush2.msra.mxu0 %v1179
        %1265 = vmatprep.subr.mxu0 0.0
        %1266 = vmatpush2.msra.mxu0 %v1178
        %1267 = vmatprep.subr.mxu0 0.0
        %1268 = vmatpush2.msra.mxu0 %v1177
        %1269 = vmatprep.subr.mxu0 0.0
        %1270 = vmatpush2.msra.mxu0 %v1176
        %1271 = vmatprep.subr.mxu0 0.0
        %1272 = vmatpush2.msra.mxu0 %v1175
        %1273 = vmatprep.subr.mxu0 0.0
        %1274 = vmatpush2.msra.mxu0 %v1174
        %1275 = vmatprep.mubr.f32.mxu0 %v1130
        %1276 = vmatmul.mubr.f32.gmra.mxu0 %v1145
        %v1277 = vpop.f32.mrf.mxu0
        %v1278 = vadd.f32 %v1210, %v1277
        %v1279 = vpop.f32.mrf.mxu0
        %1280 = vmatprep.mubr.f32.mxu0 %v1131
        %1281 = vmatmul.mubr.f32.gmra.mxu0 %v1146
        %v1282 = vpop.f32.mrf.mxu0
        %v1283 = vadd.f32 %v1210, %v1282
        %v1284 = vpop.f32.mrf.mxu0
        %1285 = vdwg.mxu0
        %1286 = vmatprep.subr.mxu0 0.0
        %1287 = vmatpush1.msra.mxu0 %v1205
        %1288 = vmatprep.subr.mxu0 0.0
        %1289 = vmatpush1.msra.mxu0 %v1204
        %1290 = vmatprep.subr.mxu0 0.0
        %1291 = vmatpush1.msra.mxu0 %v1203
        %1292 = vmatprep.subr.mxu0 0.0
        %1293 = vmatpush1.msra.mxu0 %v1202
        %1294 = vmatprep.subr.mxu0 0.0
        %1295 = vmatpush1.msra.mxu0 %v1201
        %1296 = vmatprep.subr.mxu0 0.0
        %1297 = vmatpush1.msra.mxu0 %v1200
        %1298 = vmatprep.subr.mxu0 0.0
        %1299 = vmatpush1.msra.mxu0 %v1199
        %1300 = vmatprep.subr.mxu0 0.0
        %1301 = vmatpush1.msra.mxu0 %v1198
        %1302 = vmatprep.subr.mxu0 0.0
        %1303 = vmatpush1.msra.mxu0 %v1197
        %1304 = vmatprep.subr.mxu0 0.0
        %1305 = vmatpush1.msra.mxu0 %v1196
        %1306 = vmatprep.subr.mxu0 0.0
        %1307 = vmatpush1.msra.mxu0 %v1195
        %1308 = vmatprep.subr.mxu0 0.0
        %1309 = vmatpush1.msra.mxu0 %v1194
        %1310 = vmatprep.subr.mxu0 0.0
        %1311 = vmatpush1.msra.mxu0 %v1193
        %1312 = vmatprep.subr.mxu0 0.0
        %1313 = vmatpush1.msra.mxu0 %v1192
        %1314 = vmatprep.subr.mxu0 0.0
        %1315 = vmatpush1.msra.mxu0 %v1191
        %1316 = vmatprep.subr.mxu0 0.0
        %1317 = vmatpush1.msra.mxu0 %v1190
        %1318 = vmatprep.subr.mxu0 0.0
        %1319 = vmatpush2.msra.mxu0 0.0
        %1320 = vmatprep.subr.mxu0 0.0
        %1321 = vmatpush2.msra.mxu0 0.0
        %1322 = vmatprep.subr.mxu0 0.0
        %1323 = vmatpush2.msra.mxu0 0.0
        %1324 = vmatprep.subr.mxu0 0.0
        %1325 = vmatpush2.msra.mxu0 0.0
        %1326 = vmatprep.subr.mxu0 0.0
        %1327 = vmatpush2.msra.mxu0 0.0
        %1328 = vmatprep.subr.mxu0 0.0
        %1329 = vmatpush2.msra.mxu0 0.0
        %1330 = vmatprep.subr.mxu0 0.0
        %1331 = vmatpush2.msra.mxu0 0.0
        %1332 = vmatprep.subr.mxu0 0.0
        %1333 = vmatpush2.msra.mxu0 0.0
        %1334 = vmatprep.subr.mxu0 0.0
        %1335 = vmatpush2.msra.mxu0 0.0
        %1336 = vmatprep.subr.mxu0 0.0
        %1337 = vmatpush2.msra.mxu0 0.0
        %1338 = vmatprep.subr.mxu0 0.0
        %1339 = vmatpush2.msra.mxu0 0.0
        %1340 = vmatprep.subr.mxu0 0.0
        %1341 = vmatpush2.msra.mxu0 0.0
        %1342 = vmatprep.subr.mxu0 0.0
        %1343 = vmatpush2.msra.mxu0 0.0
        %1344 = vmatprep.subr.mxu0 0.0
        %1345 = vmatpush2.msra.mxu0 0.0
        %1346 = vmatprep.subr.mxu0 0.0
        %1347 = vmatpush2.msra.mxu0 0.0
        %1348 = vmatprep.subr.mxu0 0.0
        %1349 = vmatpush2.msra.mxu0 0.0
        %1350 = vmatprep.mubr.f32.mxu0 0.0
        %1351 = vmatmul.mubr.f32.gmra.mxu0 %v1155
        %v1352 = vpop.f32.mrf.mxu0
        %v1353 = vadd.f32 %v1278, %v1352
        %v1354 = vpop.f32.mrf.mxu0
        %1355 = vmatprep.mubr.f32.mxu0 0.0
        %1356 = vmatmul.mubr.f32.gmra.mxu0 %v1156
        %v1357 = vpop.f32.mrf.mxu0
        %v1358 = vadd.f32 %v1283, %v1357
        %v1359 = vpop.f32.mrf.mxu0
        %1360 = vdwg.mxu0
        %v1361 = vmax.f32 %v1353, 0.0
        %v1362 = vmax.f32 %v1358, 0.0
        %v1363 = vrot.slane %v1361, 4
        %v1364 = vrot.slane %v1362, 4
        %v1365 = vsel %vm1134, %v1363, %v1364
        %v1366 = vsel %vm1134, %v1364, %v1363
        %v1367 = vsel %vm1143, %v1366, 0.0
        %v1368 = vsel %vm1144, %v1365, 0.0
        %v1369 = vsel %vm1153, %v1365, 0.0
        %v1370 = vsel %vm1154, %v1366, 0.0
        %s1371 = scalar_lea.vmem [#allocation5], 1920
        %v1372 = vld [vmem:[%s1371] sm:$0xff]
        %v1373 = vld [vmem:[%s1371 + $0x8] sm:$0xff]
        %v1374 = vld [vmem:[%s1371 + $0x10] sm:$0xff]
        %v1375 = vld [vmem:[%s1371 + $0x18] sm:$0xff]
        %v1376 = vld [vmem:[%s1371 + $0x20] sm:$0xff]
        %v1377 = vld [vmem:[%s1371 + $0x28] sm:$0xff]
        %v1378 = vld [vmem:[%s1371 + $0x30] sm:$0xff]
        %v1379 = vld [vmem:[%s1371 + $0x38] sm:$0xff]
        %v1380 = vld [vmem:[%s1371 + $0x40] sm:$0xff]
        %v1381 = vld [vmem:[%s1371 + $0x48] sm:$0xff]
        %v1382 = vld [vmem:[%s1371 + $0x50] sm:$0xff]
        %v1383 = vld [vmem:[%s1371 + $0x58] sm:$0xff]
        %v1384 = vld [vmem:[%s1371 + $0x60] sm:$0xff]
        %v1385 = vld [vmem:[%s1371 + $0x68] sm:$0xff]
        %v1386 = vld [vmem:[%s1371 + $0x70] sm:$0xff]
        %v1387 = vld [vmem:[%s1371 + $0x78] sm:$0xff]
        %v1388 = vld [vmem:[%s1371 + $0x80] sm:$0xff]
        %v1389 = vld [vmem:[%s1371 + $0x88] sm:$0xff]
        %v1390 = vld [vmem:[%s1371 + $0x90] sm:$0xff]
        %v1391 = vld [vmem:[%s1371 + $0x98] sm:$0xff]
        %v1392 = vld [vmem:[%s1371 + $0xa0] sm:$0xff]
        %v1393 = vld [vmem:[%s1371 + $0xa8] sm:$0xff]
        %v1394 = vld [vmem:[%s1371 + $0xb0] sm:$0xff]
        %v1395 = vld [vmem:[%s1371 + $0xb8] sm:$0xff]
        %v1396 = vld [vmem:[%s1371 + $0xc0] sm:$0xff]
        %v1397 = vld [vmem:[%s1371 + $0xc8] sm:$0xff]
        %v1398 = vld [vmem:[%s1371 + $0xd0] sm:$0xff]
        %v1399 = vld [vmem:[%s1371 + $0xd8] sm:$0xff]
        %v1400 = vld [vmem:[%s1371 + $0xe0] sm:$0xff]
        %v1401 = vld [vmem:[%s1371 + $0xe8] sm:$0xff]
        %v1402 = vld [vmem:[%s1371 + $0xf0] sm:$0xff]
        %v1403 = vld [vmem:[%s1371 + $0xf8] sm:$0xff]
        %v1404 = vld [vmem:[%s1371 + $0x100] sm:$0xff]
        %v1405 = vld [vmem:[%s1371 + $0x108] sm:$0xff]
        %v1406 = vld [vmem:[%s1371 + $0x110] sm:$0xff]
        %v1407 = vld [vmem:[%s1371 + $0x118] sm:$0xff]
        %v1408 = vld [vmem:[%s1371 + $0x120] sm:$0xff]
        %v1409 = vld [vmem:[%s1371 + $0x128] sm:$0xff]
        %v1410 = vld [vmem:[%s1371 + $0x130] sm:$0xff]
        %v1411 = vld [vmem:[%s1371 + $0x138] sm:$0xff]
        %v1412 = vld [vmem:[%s1371 + $0x140] sm:$0xff]
        %v1413 = vld [vmem:[%s1371 + $0x148] sm:$0xff]
        %v1414 = vld [vmem:[%s1371 + $0x150] sm:$0xff]
        %v1415 = vld [vmem:[%s1371 + $0x158] sm:$0xff]
        %v1416 = vld [vmem:[%s1371 + $0x160] sm:$0xff]
        %v1417 = vld [vmem:[%s1371 + $0x168] sm:$0xff]
        %v1418 = vld [vmem:[%s1371 + $0x170] sm:$0xff]
        %v1419 = vld [vmem:[%s1371 + $0x178] sm:$0xff]
        %v1420 = vld [vmem:[#allocation7 + $0x5] sm:$0x1]
        %v1421 = vlaneseq
        %v1422 = vshrl.u32 %v1421, 7
        %v1423 = vsub.s32 0, %v1422
        %v1424 = vrot.slane %v1420, %v1423
        %1425 = vmatprep.subr.mxu0 0.0
        %1426 = vmatpush1.msra.mxu0 %v1387
        %1427 = vmatprep.subr.mxu0 0.0
        %1428 = vmatpush1.msra.mxu0 %v1386
        %1429 = vmatprep.subr.mxu0 0.0
        %1430 = vmatpush1.msra.mxu0 %v1385
        %1431 = vmatprep.subr.mxu0 0.0
        %1432 = vmatpush1.msra.mxu0 %v1384
        %1433 = vmatprep.subr.mxu0 0.0
        %1434 = vmatpush1.msra.mxu0 %v1383
        %1435 = vmatprep.subr.mxu0 0.0
        %1436 = vmatpush1.msra.mxu0 %v1382
        %1437 = vmatprep.subr.mxu0 0.0
        %1438 = vmatpush1.msra.mxu0 %v1381
        %1439 = vmatprep.subr.mxu0 0.0
        %1440 = vmatpush1.msra.mxu0 %v1380
        %1441 = vmatprep.subr.mxu0 0.0
        %1442 = vmatpush1.msra.mxu0 %v1379
        %1443 = vmatprep.subr.mxu0 0.0
        %1444 = vmatpush1.msra.mxu0 %v1378
        %1445 = vmatprep.subr.mxu0 0.0
        %1446 = vmatpush1.msra.mxu0 %v1377
        %1447 = vmatprep.subr.mxu0 0.0
        %1448 = vmatpush1.msra.mxu0 %v1376
        %1449 = vmatprep.subr.mxu0 0.0
        %1450 = vmatpush1.msra.mxu0 %v1375
        %1451 = vmatprep.subr.mxu0 0.0
        %1452 = vmatpush1.msra.mxu0 %v1374
        %1453 = vmatprep.subr.mxu0 0.0
        %1454 = vmatpush1.msra.mxu0 %v1373
        %1455 = vmatprep.subr.mxu0 0.0
        %1456 = vmatpush1.msra.mxu0 %v1372
        %1457 = vmatprep.subr.mxu0 0.0
        %1458 = vmatpush2.msra.mxu0 %v1403
        %1459 = vmatprep.subr.mxu0 0.0
        %1460 = vmatpush2.msra.mxu0 %v1402
        %1461 = vmatprep.subr.mxu0 0.0
        %1462 = vmatpush2.msra.mxu0 %v1401
        %1463 = vmatprep.subr.mxu0 0.0
        %1464 = vmatpush2.msra.mxu0 %v1400
        %1465 = vmatprep.subr.mxu0 0.0
        %1466 = vmatpush2.msra.mxu0 %v1399
        %1467 = vmatprep.subr.mxu0 0.0
        %1468 = vmatpush2.msra.mxu0 %v1398
        %1469 = vmatprep.subr.mxu0 0.0
        %1470 = vmatpush2.msra.mxu0 %v1397
        %1471 = vmatprep.subr.mxu0 0.0
        %1472 = vmatpush2.msra.mxu0 %v1396
        %1473 = vmatprep.subr.mxu0 0.0
        %1474 = vmatpush2.msra.mxu0 %v1395
        %1475 = vmatprep.subr.mxu0 0.0
        %1476 = vmatpush2.msra.mxu0 %v1394
        %1477 = vmatprep.subr.mxu0 0.0
        %1478 = vmatpush2.msra.mxu0 %v1393
        %1479 = vmatprep.subr.mxu0 0.0
        %1480 = vmatpush2.msra.mxu0 %v1392
        %1481 = vmatprep.subr.mxu0 0.0
        %1482 = vmatpush2.msra.mxu0 %v1391
        %1483 = vmatprep.subr.mxu0 0.0
        %1484 = vmatpush2.msra.mxu0 %v1390
        %1485 = vmatprep.subr.mxu0 0.0
        %1486 = vmatpush2.msra.mxu0 %v1389
        %1487 = vmatprep.subr.mxu0 0.0
        %1488 = vmatpush2.msra.mxu0 %v1388
        %1489 = vmatprep.mubr.f32.mxu0 %v1361
        %1490 = vmatmul.mubr.f32.gmra.mxu0 %v1367
        %v1491 = vpop.f32.mrf.mxu0
        %v1492 = vadd.f32 %v1424, %v1491
        %v1493 = vpop.f32.mrf.mxu0
        %1494 = vmatprep.mubr.f32.mxu0 %v1362
        %1495 = vmatmul.mubr.f32.gmra.mxu0 %v1368
        %v1496 = vpop.f32.mrf.mxu0
        %v1497 = vadd.f32 %v1424, %v1496
        %v1498 = vpop.f32.mrf.mxu0
        %1499 = vdwg.mxu0
        %1500 = vmatprep.subr.mxu0 0.0
        %1501 = vmatpush1.msra.mxu0 %v1419
        %1502 = vmatprep.subr.mxu0 0.0
        %1503 = vmatpush1.msra.mxu0 %v1418
        %1504 = vmatprep.subr.mxu0 0.0
        %1505 = vmatpush1.msra.mxu0 %v1417
        %1506 = vmatprep.subr.mxu0 0.0
        %1507 = vmatpush1.msra.mxu0 %v1416
        %1508 = vmatprep.subr.mxu0 0.0
        %1509 = vmatpush1.msra.mxu0 %v1415
        %1510 = vmatprep.subr.mxu0 0.0
        %1511 = vmatpush1.msra.mxu0 %v1414
        %1512 = vmatprep.subr.mxu0 0.0
        %1513 = vmatpush1.msra.mxu0 %v1413
        %1514 = vmatprep.subr.mxu0 0.0
        %1515 = vmatpush1.msra.mxu0 %v1412
        %1516 = vmatprep.subr.mxu0 0.0
        %1517 = vmatpush1.msra.mxu0 %v1411
        %1518 = vmatprep.subr.mxu0 0.0
        %1519 = vmatpush1.msra.mxu0 %v1410
        %1520 = vmatprep.subr.mxu0 0.0
        %1521 = vmatpush1.msra.mxu0 %v1409
        %1522 = vmatprep.subr.mxu0 0.0
        %1523 = vmatpush1.msra.mxu0 %v1408
        %1524 = vmatprep.subr.mxu0 0.0
        %1525 = vmatpush1.msra.mxu0 %v1407
        %1526 = vmatprep.subr.mxu0 0.0
        %1527 = vmatpush1.msra.mxu0 %v1406
        %1528 = vmatprep.subr.mxu0 0.0
        %1529 = vmatpush1.msra.mxu0 %v1405
        %1530 = vmatprep.subr.mxu0 0.0
        %1531 = vmatpush1.msra.mxu0 %v1404
        %1532 = vmatprep.subr.mxu0 0.0
        %1533 = vmatpush2.msra.mxu0 0.0
        %1534 = vmatprep.subr.mxu0 0.0
        %1535 = vmatpush2.msra.mxu0 0.0
        %1536 = vmatprep.subr.mxu0 0.0
        %1537 = vmatpush2.msra.mxu0 0.0
        %1538 = vmatprep.subr.mxu0 0.0
        %1539 = vmatpush2.msra.mxu0 0.0
        %1540 = vmatprep.subr.mxu0 0.0
        %1541 = vmatpush2.msra.mxu0 0.0
        %1542 = vmatprep.subr.mxu0 0.0
        %1543 = vmatpush2.msra.mxu0 0.0
        %1544 = vmatprep.subr.mxu0 0.0
        %1545 = vmatpush2.msra.mxu0 0.0
        %1546 = vmatprep.subr.mxu0 0.0
        %1547 = vmatpush2.msra.mxu0 0.0
        %1548 = vmatprep.subr.mxu0 0.0
        %1549 = vmatpush2.msra.mxu0 0.0
        %1550 = vmatprep.subr.mxu0 0.0
        %1551 = vmatpush2.msra.mxu0 0.0
        %1552 = vmatprep.subr.mxu0 0.0
        %1553 = vmatpush2.msra.mxu0 0.0
        %1554 = vmatprep.subr.mxu0 0.0
        %1555 = vmatpush2.msra.mxu0 0.0
        %1556 = vmatprep.subr.mxu0 0.0
        %1557 = vmatpush2.msra.mxu0 0.0
        %1558 = vmatprep.subr.mxu0 0.0
        %1559 = vmatpush2.msra.mxu0 0.0
        %1560 = vmatprep.subr.mxu0 0.0
        %1561 = vmatpush2.msra.mxu0 0.0
        %1562 = vmatprep.subr.mxu0 0.0
        %1563 = vmatpush2.msra.mxu0 0.0
        %1564 = vmatprep.mubr.f32.mxu0 0.0
        %1565 = vmatmul.mubr.f32.gmra.mxu0 %v1369
        %v1566 = vpop.f32.mrf.mxu0
        %v1567 = vadd.f32 %v1492, %v1566
        %v1568 = vpop.f32.mrf.mxu0
        %1569 = vmatprep.mubr.f32.mxu0 0.0
        %1570 = vmatmul.mubr.f32.gmra.mxu0 %v1370
        %v1571 = vpop.f32.mrf.mxu0
        %v1572 = vadd.f32 %v1497, %v1571
        %v1573 = vpop.f32.mrf.mxu0
        %1574 = vdwg.mxu0
        %v1575 = vadd.f32 %v1567, %v1130
        %v1576 = vadd.f32 %v1572, %v1131
        %v1577 = vmax.f32 %v1575, 0.0
        %v1578 = vmax.f32 %v1576, 0.0
        %1579 = vst [vmem:[%s215] sm:$0xff] %v1577
        %1580 = vst [vmem:[%s215 + $0x8] sm:$0xff] %v1578
        %s1581 = sand.u32 %s97, 1
        %s1582 = scalar_lea.sflag [#allocation4], %s1581
        %s1583 = sand.u32 %s97, 1
        %s1584 = smul.addr %s1583, 16
        %s1585 = scalar_lea.vmem [#allocation8], %s1584
        // Predicated region
        $region45: #{tpu_custom_call.1} parent=31 // pred_check
          %p1586 = pneg %p107
        $region46: #{tpu_custom_call.1} parent=31 // pred_check_branch
          %1588 = sbr.rel (%p1586) target = $region48
        $region47: #{tpu_custom_call.1} parent=31 // pred_region
          %s1590 = ssub.s32 256, 256
          %1591 = vsyncadd %s1582, %s1590
          %s1592 = smul.addr %s21, 2
          %s1593 = smul.addr %s1592, 128
          %s1594 = scalar_lea.hbm %s3, %s1593
          %s1595 = sshll.u32 %s1585, 4
          %s1596 = int_to_ptr.vmem [resolvable:$true] %s1595
          %1601 = dma.vmem_to_hbm [thread:$0]  %s1596, 256, %s1594, %s1582, 128, 128, 8
        $region48: #{tpu_custom_call.1} parent=31 // pred_fallthru
          _
      $region32: #{tpu_custom_call.1} parent=5 // pred_fallthru
        _
      %p1602 = scmp.le.s32.totalorder 2, %s16
      // Predicated region
      $region49: #{tpu_custom_call.1} parent=5 // pred_check
        %p1603 = pneg %p1602
      $region50: #{tpu_custom_call.1} parent=5 // pred_check_branch
        %1605 = sbr.rel (%p1603) target = $region52
      $region51: #{tpu_custom_call.1} parent=5 // pred_region
        %s1606 = ssub.s32 %s16, 2
        // Predicated region
        $region53: #{tpu_custom_call.1} parent=51 // pred_check
          %p1607 = pneg %p113
        $region54: #{tpu_custom_call.1} parent=51 // pred_check_branch
          %1609 = sbr.rel (%p1607) target = $region56
        $region55: #{tpu_custom_call.1} parent=51 // pred_region
          %s1610 = sand.u32 %s98, 1
          %s1611 = scalar_lea.sflag [#allocation4], %s1610
          %s1612 = sand.u32 %s98, 1
          %s1613 = smul.addr %s1612, 16
          %s1614 = scalar_lea.vmem [#allocation8], %s1613
          %1615 = dma.done %s1611, 256
        $region56: #{tpu_custom_call.1} parent=51 // pred_fallthru
          _
      $region52: #{tpu_custom_call.1} parent=5 // pred_fallthru
        _
    $region6: #{tpu_custom_call.1} parent=1 // loop_footer
      %s20 = sadd.s32 1, %s16
    $region7: #{tpu_custom_call.1} parent=1 // loop_footer_branch
      %15 = sbr.rel target = $region3
    $region8: #{tpu_custom_call.1} parent=1 // loop_exit
      _
    %1616 = vsyncpa [#allocation3], 1
    %s1617 = scalar_lea.sflag [#allocation3], 1
    %1618 = vsyncpa %s1617, 1
    %1619 = vsyncpa [#allocation6], 1
    %1620 = vsyncpa [#allocation4], 1
    %s1621 = scalar_lea.sflag [#allocation4], 1
    %1622 = vsyncpa %s1621, 1

</llo_original>
